<compile_context>
chip_gen: v5e
topology: v5e:2x2
jax: 0.10.0
libtpu: 0.0.40
codegen_flags: <defaults>
</compile_context>

<pallas_src>
import functools

import jax
import jax.numpy as jnp
from jax import lax
from jax.experimental import pallas as pl
from jax.experimental.pallas import tpu as pltpu

EPS = 1e-5
EMB_DIM = 128          # nn.Embedding(num, 128) in the reference module
LANE = 128             # lane width
SUBLANE_BF16 = 16      # bf16 sublane packing granularity
MAX_TILE_ROWS = 512    # keeps double-buffered blocks ~0.7 MiB (fits v5e/v6e/v7x)


def _round_up(x, m):
    return ((x + m - 1) // m) * m


def _cdiv(a, b):
    return -(-a // b)


def _pick_tile(max_rows):
    # Multiple of 16 (bf16 sublane packing).  Large tiles amortize the
    # ~0.35 us per-grid-step overhead; 512 (multiple of 256) is plenty and
    # keeps VMEM usage tiny on every generation.
    return min(MAX_TILE_ROWS, _round_up(max(max_rows, 1), SUBLANE_BF16))


# ------------------------------- Pallas kernel ------------------------------
def _student_kernel(meta_ref, x_ref, w1_ref, w2_ref, vec_ref, o_ref,
                    s1_ref, gram_ref, wcomb_ref, ceff_ref):
    """Grid = (type t, phase p, row tile r).  Ref shapes (type axis squeezed):
         x_ref     [TILE, Dpad]  bf16  concatenated per-type rows (zero padded)
         w1_ref    [Dpad, Dout]  bf16  pre-transposed Linear1 weight
         w2_ref    [Dout, Dout]  bf16  pre-transposed Linear2 weight
         vec_ref   [8,    Dout]  f32   rows: b1, g1, be1, b2, g2, be2, 0, 0
         o_ref     [TILE, Dout]  bf16
       scratch (persists across grid steps, re-initialized per type):
         s1_ref    [1, Dout]     f32   sum_i y_i            (y = x @ W1)
         gram_ref  [Dout, Dout]  f32   sum_i y_i^T y_i
         wcomb_ref [Dpad, Dout]  bf16  folded W1 @ diag(scale1) @ W2 * scale2
         ceff_ref  [1, Dout]     f32   folded output offset
       meta_ref (SMEM, scalar-prefetched) [3, T]: rows = n, nblocks, blk_off.
    """
    t = pl.program_id(0)
    p = pl.program_id(1)
    r = pl.program_id(2)
    n = meta_ref[0, t]
    nblk = meta_ref[1, t]
    dout = gram_ref.shape[0]
    f32 = jnp.float32

    # ---------- phase 0: accumulate first & second moments of y = x @ W1 ----
    @pl.when((p == 0) & (r == 0))
    def _():
        s1_ref[...] = jnp.zeros_like(s1_ref)
        gram_ref[...] = jnp.zeros_like(gram_ref)

    @pl.when((p == 0) & (r < nblk))
    def _():
        # Padded rows of x are exactly zero -> they contribute nothing to the
        # moments, so no jnp.where row mask is needed (only the divisor below
        # uses the true row count n).
        y = jnp.dot(x_ref[...], w1_ref[...], preferred_element_type=f32)
        s1_ref[...] += jnp.sum(y, axis=0, keepdims=True)
        gram_ref[...] += lax.dot_general(
            y, y, dimension_numbers=(((0,), (0,)), ((), ())),
            preferred_element_type=f32)

    # ---------- phase boundary: fold BN1 -> Linear2 -> BN2 analytically -----
    @pl.when((p == 1) & (r == 0))
    def _():
        # Training-mode BatchNorm subtracts the batch mean, so the Linear
        # biases b1/b2 and BN1's beta cancel exactly; only g1, g2, be2 reach
        # the output.  Exact statistics from s1 and the Gram:
        #   mu_y = E[y],  var1 = E[y^2] - mu_y^2
        #   A    = diag(scale1) @ W2,  m = mu_y @ A
        #   var2 = diag(A^T E[y^T y] A) - m^2   (BN2 variance mixes columns)
        #   out  = x @ (W1 @ A * scale2) + (be2 - m * scale2)
        inv_n = 1.0 / jnp.maximum(n, 1).astype(f32)
        vec = vec_ref[...]
        g1, g2, be2 = vec[1:2], vec[4:5], vec[5:6]
        w2f = w2_ref[...].astype(f32)

        row_i = lax.broadcasted_iota(jnp.int32, (dout, dout), 0)
        col_i = lax.broadcasted_iota(jnp.int32, (dout, dout), 1)
        eye = jnp.where(row_i == col_i, 1.0, 0.0).astype(f32)

        mu_y = s1_ref[...] * inv_n                              # [1, D]
        gn = gram_ref[...] * inv_n                              # E[y^T y]
        ey2 = jnp.sum(gn * eye, axis=0, keepdims=True)          # diag -> E[y^2]
        var1 = jnp.maximum(ey2 - mu_y * mu_y, 0.0)
        scale1 = g1 * lax.rsqrt(var1 + EPS)

        a = jnp.dot(eye * scale1, w2f, preferred_element_type=f32)  # diag(s1)@W2
        m = jnp.sum(jnp.dot(eye * mu_y, a, preferred_element_type=f32),
                    axis=0, keepdims=True)                          # mu_y @ A
        ga = jnp.dot(gn, a, preferred_element_type=f32)
        eh2 = jnp.sum(a * ga, axis=0, keepdims=True)                # diag(A^T Gn A)
        var2 = jnp.maximum(eh2 - m * m, 0.0)
        scale2 = g2 * lax.rsqrt(var2 + EPS)

        w_eff = a * scale2                                          # col-scaled
        w1f = w1_ref[...].astype(f32)
        wcomb_ref[...] = jnp.dot(
            w1f, w_eff, preferred_element_type=f32).astype(wcomb_ref.dtype)
        ceff_ref[...] = be2 - m * scale2

    # ---------- phase 1: one lane-dense matmul per row tile -----------------
    @pl.when((p == 1) & (r < nblk))
    def _():
        out = jnp.dot(x_ref[...], wcomb_ref[...],
                      preferred_element_type=f32) + ceff_ref[...]
        o_ref[...] = out.astype(o_ref.dtype)


def _student_pallas(meta, x_cat, w1, w2, vec, *, tile, rmax):
    total_rows, dpad = x_cat.shape
    t_types, _, dout = w1.shape

    def x_map(t, p, r, meta):
        # Clamp so slack row tiles of short types never re-DMA a new block.
        return (meta[2, t] + jnp.minimum(r, meta[1, t] - 1), 0)

    def out_map(t, p, r, meta):
        # During phase 0 the output block index stays constant, so no block is
        # flushed until phase 1 has written it.  Indices are monotonic.
        return (meta[2, t] + p * jnp.minimum(r, meta[1, t] - 1), 0)

    grid_spec = pltpu.PrefetchScalarGridSpec(
        num_scalar_prefetch=1,
        grid=(t_types, 2, rmax),
        in_specs=[
            pl.BlockSpec((tile, dpad), x_map),
            pl.BlockSpec((None, dpad, dout), lambda t, p, r, meta: (t, 0, 0)),
            pl.BlockSpec((None, dout, dout), lambda t, p, r, meta: (t, 0, 0)),
            pl.BlockSpec((None, 8, dout), lambda t, p, r, meta: (t, 0, 0)),
        ],
        out_specs=pl.BlockSpec((tile, dout), out_map),
        scratch_shapes=[
            pltpu.VMEM((1, dout), jnp.float32),        # s1
            pltpu.VMEM((dout, dout), jnp.float32),     # Gram
            pltpu.VMEM((dpad, dout), jnp.bfloat16),    # folded W_comb
            pltpu.VMEM((1, dout), jnp.float32),        # c_eff
        ],
    )

    # VMEM budget sized to the actual block set (double-buffered I/O + scratch).
    blk_bytes = 2 * (tile * dpad * 2 + tile * dout * 2
                     + dpad * dout * 2 + dout * dout * 2 + 8 * dout * 4)
    scratch_bytes = dout * dout * 4 + dpad * dout * 2 + 2 * dout * 4
    vmem_limit = int(min(max(blk_bytes + scratch_bytes + (4 << 20), 16 << 20),
                         60 << 20))

    flops = 2 * total_rows * dout * (2 * dpad + dout)   # 2 data passes + Gram
    bytes_accessed = int(2 * x_cat.size * x_cat.dtype.itemsize
                         + w1.size * w1.dtype.itemsize
                         + w2.size * w2.dtype.itemsize
                         + vec.size * vec.dtype.itemsize
                         + total_rows * dout * 2)
    return pl.pallas_call(
        _student_kernel,
        out_shape=jax.ShapeDtypeStruct((total_rows, dout), jnp.bfloat16),
        grid_spec=grid_spec,
        compiler_params=pltpu.CompilerParams(
            dimension_semantics=("parallel", "arbitrary", "arbitrary"),
            vmem_limit_bytes=vmem_limit),
        cost_estimate=pl.CostEstimate(
            flops=flops,
            transcendentals=2 * t_types * dout,
            bytes_accessed=bytes_accessed),
    )(meta, x_cat, w1, w2, vec)


# ------------------------- jitted forward (all types) -----------------------
@functools.partial(jax.jit, static_argnames=("output_dim",))
def _student_core(xs, embs, w1, w2, vec, *, output_dim):
    dpad = w1.shape[1]
    feats, ns = [], []
    for x, emb in zip(xs, embs):
        if emb is not None:
            # Embedding lookup + squeeze (index glue feeding the kernel).
            # TODO(synk): fuse this gather + bf16 cast + per-type concat into
            # the kernel (pl.ANY source + manual DMA) to remove the extra HBM
            # round trip of the padded bf16 copy of x.
            x = jnp.take(emb, x.reshape(-1).astype(jnp.int32), axis=0)
        ns.append(x.shape[0])
        feats.append(x)

    tile = _pick_tile(max(ns))
    nblks = [max(_cdiv(n, tile), 1) for n in ns]
    offs = [0]
    for b in nblks:
        offs.append(offs[-1] + b)
    rmax = max(nblks)

    padded = [
        jnp.pad(x.astype(jnp.bfloat16),
                ((0, nblks[i] * tile - x.shape[0]), (0, dpad - x.shape[1])))
        for i, x in enumerate(feats)
    ]
    x_cat = jnp.concatenate(padded, axis=0)            # [sum_t nblk_t*tile, Dpad]
    meta = jnp.array([ns, nblks, offs[:-1]], dtype=jnp.int32)   # [3, T]

    out = _student_pallas(meta, x_cat, w1, w2, vec, tile=tile, rmax=rmax)
    return tuple(out[offs[i] * tile: offs[i] * tile + ns[i], :output_dim]
                 for i in range(len(xs)))


def student_forward(x_dict, packed):
    order = packed["order"]
    xs = tuple(jnp.asarray(x_dict[nt]) for nt in order)
    embs = tuple(packed["emb"][nt] for nt in order)
    outs = _student_core(xs, embs, packed["w1"], packed["w2"], packed["vec"],
                         output_dim=packed["output_dim"])
    return dict(zip(order, outs))


# ------------------------- parameter construction ---------------------------
def _xavier_uniform(key, shape):
    fan_out, fan_in = shape[0], shape[1]
    limit = (6.0 / (fan_in + fan_out)) ** 0.5
    return jax.random.uniform(key, shape, jnp.float32, -limit, limit)


def init_student_params(key, input_dim, output_dim, node_types,
                        transductive_types=None):
    """Raw PyTorch-layout f32 parameters (also used by the reference check).
    Biases / gammas / betas are randomized to exercise every term."""
    params = {}
    for nt in node_types:
        key, k_emb, k_w1, k_w2, k_v = jax.random.split(key, 5)
        kv = jax.random.split(k_v, 6)
        p = {}
        if transductive_types is not None and nt in transductive_types:
            p["emb"] = _xavier_uniform(k_emb, (transductive_types[nt], EMB_DIM))
        else:
            p["emb"] = None
        p["w1"] = _xavier_uniform(k_w1, (output_dim, input_dim))  # [out, in]
        p["b1"] = 0.5 * jax.random.normal(kv[0], (output_dim,), jnp.float32)
        p["g1"] = 1.0 + 0.3 * jax.random.normal(kv[1], (output_dim,), jnp.float32)
        p["be1"] = 0.5 * jax.random.normal(kv[2], (output_dim,), jnp.float32)
        p["w2"] = _xavier_uniform(k_w2, (output_dim, output_dim))
        p["b2"] = 0.5 * jax.random.normal(kv[3], (output_dim,), jnp.float32)
        p["g2"] = 1.0 + 0.3 * jax.random.normal(kv[4], (output_dim,), jnp.float32)
        p["be2"] = 0.5 * jax.random.normal(kv[5], (output_dim,), jnp.float32)
        params[nt] = p
    return params


def pack_student_params(params, node_types, input_dim, output_dim,
                        compute_dtype=jnp.bfloat16):
    """Pre-transpose, zero-pad to lane-dense widths and stack all per-type
    weights once at init; pack the six bias/gamma/beta vectors into one tile
    (the kernel only needs g1, g2, be2 -- b1/b2/be1 cancel under training-mode
    BatchNorm -- but all six are packed for interface completeness)."""
    order = tuple(node_types)
    dpad = _round_up(input_dim, LANE)
    dout = _round_up(output_dim, LANE)
    w1s, w2s, vecs, emb = [], [], [], {}
    for nt in order:
        p = params[nt]
        w1t = jnp.zeros((dpad, dout), jnp.float32)
        w1t = w1t.at[:p["w1"].shape[1], :output_dim].set(p["w1"].T)
        w2t = jnp.zeros((dout, dout), jnp.float32)
        w2t = w2t.at[:output_dim, :output_dim].set(p["w2"].T)
        vec = jnp.zeros((8, dout), jnp.float32)
        vec = vec.at[1, :].set(1.0)                 # gamma1 pad = 1
        vec = vec.at[4, :].set(1.0)                 # gamma2 pad = 1
        vec = vec.at[0, :output_dim].set(p["b1"])
        vec = vec.at[1, :output_dim].set(p["g1"])
        vec = vec.at[2, :output_dim].set(p["be1"])
        vec = vec.at[3, :output_dim].set(p["b2"])
        vec = vec.at[4, :output_dim].set(p["g2"])
        vec = vec.at[5, :output_dim].set(p["be2"])
        w1s.append(w1t)
        w2s.append(w2t)
        vecs.append(vec)
        emb[nt] = p["emb"]
    return {
        "order": order,
        "output_dim": output_dim,
        "w1": jnp.stack(w1s).astype(compute_dtype),   # [T, Dpad, Dout]
        "w2": jnp.stack(w2s).astype(compute_dtype),   # [T, Dout, Dout]
        "vec": jnp.stack(vecs),                       # [T, 8,    Dout] f32
        "emb": emb,
    }


# ------------------------------ pure-JAX reference ---------------------------
def _reference_forward(x_dict, params):
    def bn(h, g, b):
        mu = h.mean(axis=0)
        var = ((h - mu) ** 2).mean(axis=0)
        return (h - mu) / jnp.sqrt(var + EPS) * g + b

    out = {}
    for nt, x in x_dict.items():
        p = params[nt]
        if p["emb"] is not None:
            x = jnp.take(p["emb"], jnp.asarray(x).reshape(-1), axis=0)
        x = jnp.asarray(x, jnp.float32)
        h = x @ p["w1"].T + p["b1"]
        h = bn(h, p["g1"], p["be1"])
        h = h @ p["w2"].T + p["b2"]
        out[nt] = bn(h, p["g2"], p["be2"])
    return out


# ----------------------------------- main ------------------------------------
if __name__ == "__main__":
    input_dim = 128     # must equal embedding dim (128) for transductive types
    output_dim = 64
    node_types = ["author", "paper"]
    transductive_types = {"paper": 50}   # 'paper' uses an Embedding table

    key = jax.random.PRNGKey(0)
    params = init_student_params(key, input_dim, output_dim, node_types,
                                 transductive_types)
    packed = pack_student_params(params, node_types, input_dim, output_dim)

    k_feat, k_idx = jax.random.split(jax.random.PRNGKey(0))
    x_dict = {
        "author": jax.random.normal(k_feat, (16, input_dim), jnp.float32),
        "paper": jax.random.randint(k_idx, (12, 1), 0, 50, jnp.int32),
    }

    out = student_forward(x_dict, packed)
    jax.block_until_ready(out)

    assert out["author"].shape == (16, output_dim)
    assert out["paper"].shape == (12, output_dim)

    ref = _reference_forward(x_dict, params)
    for nt in node_types:
        assert bool(jnp.all(jnp.isfinite(out[nt].astype(jnp.float32)))), nt
        # bf16 MXU inputs / bf16 output with f32 accumulation and f32 BN math:
        # loose tolerance vs. the f32 reference.
        assert bool(jnp.allclose(out[nt].astype(jnp.float32), ref[nt],
                                 atol=5e-2, rtol=5e-2)), nt

    print("KERNEL_OK")
</pallas_src>

<mosaic_0001>
module attributes {stable_mosaic.version = 11 : i64} {
  func.func @_student_kernel(%arg0: i32, %arg1: i32, %arg2: i32, %arg3: memref<3x2xi32, #tpu.memory_space<smem>>, %arg4: memref<16x128xbf16, #tpu.memory_space<vmem>>, %arg5: memref<1x128x128xbf16, #tpu.memory_space<vmem>>, %arg6: memref<1x128x128xbf16, #tpu.memory_space<vmem>>, %arg7: memref<1x8x128xf32, #tpu.memory_space<vmem>>, %arg8: memref<16x128xbf16, #tpu.memory_space<vmem>>, %arg9: memref<1x128xf32, #tpu.memory_space<vmem>>, %arg10: memref<128x128xf32, #tpu.memory_space<vmem>>, %arg11: memref<128x128xbf16, #tpu.memory_space<vmem>>, %arg12: memref<1x128xf32, #tpu.memory_space<vmem>>) attributes {dimension_semantics = [#tpu.dimension_semantics<parallel>, #tpu.dimension_semantics<arbitrary>, #tpu.dimension_semantics<arbitrary>], iteration_bounds = array<i64: 2, 2, 1>, scalar_prefetch = 1 : i64, scratch_operands = 4 : i64, tpu.core_type = #tpu.core_type<tc>, window_params = [{transform_indices = @transform_0, window_bounds = array<i64: 16, 128>}, {transform_indices = @transform_1, window_bounds = array<i64: 1, 128, 128>}, {transform_indices = @transform_2, window_bounds = array<i64: 1, 128, 128>}, {transform_indices = @transform_3, window_bounds = array<i64: 1, 8, 128>}, {transform_indices = @transform_4, window_bounds = array<i64: 16, 128>}]} {
    %c0 = arith.constant 0 : index
    %0 = arith.index_cast %arg0 : i32 to index
    %1 = memref.load %arg3[%c0, %0] : memref<3x2xi32, #tpu.memory_space<smem>>
    %c1 = arith.constant 1 : index
    %2 = arith.index_cast %arg0 : i32 to index
    %3 = memref.load %arg3[%c1, %2] : memref<3x2xi32, #tpu.memory_space<smem>>
    %c0_i32 = arith.constant 0 : i32
    %4 = arith.cmpi eq, %arg1, %c0_i32 : i32
    %c0_i32_0 = arith.constant 0 : i32
    %5 = arith.cmpi eq, %arg2, %c0_i32_0 : i32
    %6 = arith.andi %4, %5 : i1
    %7 = arith.extui %6 : i1 to i32
    %c0_i32_1 = arith.constant 0 : i32
    %8 = arith.cmpi ne, %7, %c0_i32_1 : i32
    scf.if %8 {
      %cst = arith.constant 0.000000e+00 : f32
      %24 = vector.broadcast %cst : f32 to vector<1x128xf32>
      %c0_8 = arith.constant 0 : index
      %c0_9 = arith.constant 0 : index
      %25 = vector.load %arg9[%c0_8, %c0_9] : memref<1x128xf32, #tpu.memory_space<vmem>>, vector<1x128xf32>
      tpu.vector_store %arg9[%c0_8, %c0_9], %24 {strides = array<i32>} : memref<1x128xf32, #tpu.memory_space<vmem>>, vector<1x128xf32>,
      %cst_10 = arith.constant 0.000000e+00 : f32
      %26 = vector.broadcast %cst_10 : f32 to vector<128x128xf32>
      %c0_11 = arith.constant 0 : index
      %c0_12 = arith.constant 0 : index
      %27 = vector.load %arg10[%c0_11, %c0_12] : memref<128x128xf32, #tpu.memory_space<vmem>>, vector<128x128xf32>
      tpu.vector_store %arg10[%c0_11, %c0_12], %26 {strides = array<i32>} : memref<128x128xf32, #tpu.memory_space<vmem>>, vector<128x128xf32>,
    } else {
    }
    %c0_i32_2 = arith.constant 0 : i32
    %9 = arith.cmpi eq, %arg1, %c0_i32_2 : i32
    %10 = arith.cmpi slt, %arg2, %3 : i32
    %11 = arith.andi %9, %10 : i1
    %12 = arith.extui %11 : i1 to i32
    %c0_i32_3 = arith.constant 0 : i32
    %13 = arith.cmpi ne, %12, %c0_i32_3 : i32
    scf.if %13 {
      %c0_8 = arith.constant 0 : index
      %c0_9 = arith.constant 0 : index
      %24 = vector.load %arg4[%c0_8, %c0_9] : memref<16x128xbf16, #tpu.memory_space<vmem>>, vector<16x128xbf16>
      %c0_10 = arith.constant 0 : index
      %c0_11 = arith.constant 0 : index
      %c0_12 = arith.constant 0 : index
      %25 = vector.load %arg5[%c0_10, %c0_11, %c0_12] : memref<1x128x128xbf16, #tpu.memory_space<vmem>>, vector<1x128x128xbf16>
      %26 = vector.shape_cast %25 : vector<1x128x128xbf16> to vector<128x128xbf16>
      %cst = arith.constant dense<0.000000e+00> : vector<16x128xf32>
      %27 = tpu.matmul %24, %26, %cst {dimension_numbers = #tpu.dot_dimension_numbers<[1], [0], [0], [1], [0, 0, 1, 1], [], []>} : vector<16x128xbf16>, vector<128x128xbf16>, vector<16x128xf32> -> vector<16x128xf32>
      %c0_13 = arith.constant 0 : index
      %c0_14 = arith.constant 0 : index
      %28 = vector.load %arg9[%c0_13, %c0_14] : memref<1x128xf32, #tpu.memory_space<vmem>>, vector<1x128xf32>
      %cst_15 = arith.constant dense<0.000000e+00> : vector<128xf32>
      %29 = vector.multi_reduction <add>, %27, %cst_15 [0] : vector<16x128xf32> to vector<128xf32>
      %30 = vector.shape_cast %29 : vector<128xf32> to vector<1x128xf32>
      %31 = arith.addf %28, %30 : vector<1x128xf32>
      %c0_16 = arith.constant 0 : index
      %c0_17 = arith.constant 0 : index
      %32 = vector.load %arg9[%c0_16, %c0_17] : memref<1x128xf32, #tpu.memory_space<vmem>>, vector<1x128xf32>
      tpu.vector_store %arg9[%c0_16, %c0_17], %31 {strides = array<i32>} : memref<1x128xf32, #tpu.memory_space<vmem>>, vector<1x128xf32>,
      %c0_18 = arith.constant 0 : index
      %c0_19 = arith.constant 0 : index
      %33 = vector.load %arg10[%c0_18, %c0_19] : memref<128x128xf32, #tpu.memory_space<vmem>>, vector<128x128xf32>
      %cst_20 = arith.constant dense<0.000000e+00> : vector<128x128xf32>
      %34 = tpu.matmul %27, %27, %cst_20 {dimension_numbers = #tpu.dot_dimension_numbers<[0], [0], [1], [1], [0, 1, 1, 1], [], []>} : vector<16x128xf32>, vector<16x128xf32>, vector<128x128xf32> -> vector<128x128xf32>
      %35 = arith.addf %33, %34 : vector<128x128xf32>
      %c0_21 = arith.constant 0 : index
      %c0_22 = arith.constant 0 : index
      %36 = vector.load %arg10[%c0_21, %c0_22] : memref<128x128xf32, #tpu.memory_space<vmem>>, vector<128x128xf32>
      tpu.vector_store %arg10[%c0_21, %c0_22], %35 {strides = array<i32>} : memref<128x128xf32, #tpu.memory_space<vmem>>, vector<128x128xf32>,
    } else {
    }
    %c1_i32 = arith.constant 1 : i32
    %14 = arith.cmpi eq, %arg1, %c1_i32 : i32
    %c0_i32_4 = arith.constant 0 : i32
    %15 = arith.cmpi eq, %arg2, %c0_i32_4 : i32
    %16 = arith.andi %14, %15 : i1
    %17 = arith.extui %16 : i1 to i32
    %c0_i32_5 = arith.constant 0 : i32
    %18 = arith.cmpi ne, %17, %c0_i32_5 : i32
    scf.if %18 {
      %c1_i32_8 = arith.constant 1 : i32
      %24 = arith.maxsi %1, %c1_i32_8 : i32
      %25 = arith.sitofp %24 : i32 to f32
      %cst = arith.constant 1.000000e+00 : f32
      %26 = arith.divf %cst, %25 : f32
      %c0_9 = arith.constant 0 : index
      %c0_10 = arith.constant 0 : index
      %c0_11 = arith.constant 0 : index
      %27 = vector.load %arg7[%c0_9, %c0_10, %c0_11] : memref<1x8x128xf32, #tpu.memory_space<vmem>>, vector<1x8x128xf32>
      %28 = vector.shape_cast %27 : vector<1x8x128xf32> to vector<8x128xf32>
      %29 = vector.extract_strided_slice %28 {offsets = [1, 0], sizes = [1, 128], strides = [1, 1]} : vector<8x128xf32> to vector<1x128xf32>
      %30 = vector.extract_strided_slice %28 {offsets = [4, 0], sizes = [1, 128], strides = [1, 1]} : vector<8x128xf32> to vector<1x128xf32>
      %31 = vector.extract_strided_slice %28 {offsets = [5, 0], sizes = [1, 128], strides = [1, 1]} : vector<8x128xf32> to vector<1x128xf32>
      %c0_12 = arith.constant 0 : index
      %c0_13 = arith.constant 0 : index
      %c0_14 = arith.constant 0 : index
      %32 = vector.load %arg6[%c0_12, %c0_13, %c0_14] : memref<1x128x128xbf16, #tpu.memory_space<vmem>>, vector<1x128x128xbf16>
      %33 = vector.shape_cast %32 : vector<1x128x128xbf16> to vector<128x128xbf16>
      %34 = arith.extf %33 : vector<128x128xbf16> to vector<128x128xf32>
      %35 = tpu.iota {dimensions = array<i32: 0>} : vector<128x128xi32>
      %36 = tpu.iota {dimensions = array<i32: 1>} : vector<128x128xi32>
      %37 = arith.cmpi eq, %35, %36 : vector<128x128xi32>
      %cst_15 = arith.constant 1.000000e+00 : f32
      %cst_16 = arith.constant 0.000000e+00 : f32
      %38 = vector.broadcast %cst_15 : f32 to vector<128x128xf32>
      %39 = vector.broadcast %cst_16 : f32 to vector<128x128xf32>
      %40 = arith.select %37, %38, %39 : vector<128x128xi1>, vector<128x128xf32>
      %c0_17 = arith.constant 0 : index
      %c0_18 = arith.constant 0 : index
      %41 = vector.load %arg9[%c0_17, %c0_18] : memref<1x128xf32, #tpu.memory_space<vmem>>, vector<1x128xf32>
      %42 = vector.broadcast %26 : f32 to vector<1x128xf32>
      %43 = arith.mulf %41, %42 : vector<1x128xf32>
      %c0_19 = arith.constant 0 : index
      %c0_20 = arith.constant 0 : index
      %44 = vector.load %arg10[%c0_19, %c0_20] : memref<128x128xf32, #tpu.memory_space<vmem>>, vector<128x128xf32>
      %45 = vector.broadcast %26 : f32 to vector<128x128xf32>
      %46 = arith.mulf %44, %45 : vector<128x128xf32>
      %47 = arith.mulf %46, %40 : vector<128x128xf32>
      %cst_21 = arith.constant dense<0.000000e+00> : vector<128xf32>
      %48 = vector.multi_reduction <add>, %47, %cst_21 [0] : vector<128x128xf32> to vector<128xf32>
      %49 = vector.shape_cast %48 : vector<128xf32> to vector<1x128xf32>
      %50 = arith.mulf %43, %43 : vector<1x128xf32>
      %51 = arith.subf %49, %50 : vector<1x128xf32>
      %cst_22 = arith.constant 0.000000e+00 : f32
      %52 = vector.broadcast %cst_22 : f32 to vector<1x128xf32>
      %53 = arith.maximumf %51, %52 : vector<1x128xf32>
      %cst_23 = arith.constant 9.99999974E-6 : f32
      %54 = vector.broadcast %cst_23 : f32 to vector<1x128xf32>
      %55 = arith.addf %53, %54 : vector<1x128xf32>
      %56 = math.rsqrt %55 : vector<1x128xf32>
      %57 = arith.mulf %29, %56 : vector<1x128xf32>
      %58 = vector.broadcast %57 : vector<1x128xf32> to vector<128x128xf32>
      %59 = arith.mulf %40, %58 : vector<128x128xf32>
      %cst_24 = arith.constant dense<0.000000e+00> : vector<128x128xf32>
      %60 = tpu.matmul %59, %34, %cst_24 {dimension_numbers = #tpu.dot_dimension_numbers<[1], [0], [0], [1], [0, 0, 1, 1], [], []>} : vector<128x128xf32>, vector<128x128xf32>, vector<128x128xf32> -> vector<128x128xf32>
      %61 = vector.broadcast %43 : vector<1x128xf32> to vector<128x128xf32>
      %62 = arith.mulf %40, %61 : vector<128x128xf32>
      %cst_25 = arith.constant dense<0.000000e+00> : vector<128x128xf32>
      %63 = tpu.matmul %62, %60, %cst_25 {dimension_numbers = #tpu.dot_dimension_numbers<[1], [0], [0], [1], [0, 0, 1, 1], [], []>} : vector<128x128xf32>, vector<128x128xf32>, vector<128x128xf32> -> vector<128x128xf32>
      %cst_26 = arith.constant dense<0.000000e+00> : vector<128xf32>
      %64 = vector.multi_reduction <add>, %63, %cst_26 [0] : vector<128x128xf32> to vector<128xf32>
      %65 = vector.shape_cast %64 : vector<128xf32> to vector<1x128xf32>
      %cst_27 = arith.constant dense<0.000000e+00> : vector<128x128xf32>
      %66 = tpu.matmul %46, %60, %cst_27 {dimension_numbers = #tpu.dot_dimension_numbers<[1], [0], [0], [1], [0, 0, 1, 1], [], []>} : vector<128x128xf32>, vector<128x128xf32>, vector<128x128xf32> -> vector<128x128xf32>
      %67 = arith.mulf %60, %66 : vector<128x128xf32>
      %cst_28 = arith.constant dense<0.000000e+00> : vector<128xf32>
      %68 = vector.multi_reduction <add>, %67, %cst_28 [0] : vector<128x128xf32> to vector<128xf32>
      %69 = vector.shape_cast %68 : vector<128xf32> to vector<1x128xf32>
      %70 = arith.mulf %65, %65 : vector<1x128xf32>
      %71 = arith.subf %69, %70 : vector<1x128xf32>
      %cst_29 = arith.constant 0.000000e+00 : f32
      %72 = vector.broadcast %cst_29 : f32 to vector<1x128xf32>
      %73 = arith.maximumf %71, %72 : vector<1x128xf32>
      %cst_30 = arith.constant 9.99999974E-6 : f32
      %74 = vector.broadcast %cst_30 : f32 to vector<1x128xf32>
      %75 = arith.addf %73, %74 : vector<1x128xf32>
      %76 = math.rsqrt %75 : vector<1x128xf32>
      %77 = arith.mulf %30, %76 : vector<1x128xf32>
      %78 = vector.broadcast %77 : vector<1x128xf32> to vector<128x128xf32>
      %79 = arith.mulf %60, %78 : vector<128x128xf32>
      %c0_31 = arith.constant 0 : index
      %c0_32 = arith.constant 0 : index
      %c0_33 = arith.constant 0 : index
      %80 = vector.load %arg5[%c0_31, %c0_32, %c0_33] : memref<1x128x128xbf16, #tpu.memory_space<vmem>>, vector<1x128x128xbf16>
      %81 = vector.shape_cast %80 : vector<1x128x128xbf16> to vector<128x128xbf16>
      %82 = arith.extf %81 : vector<128x128xbf16> to vector<128x128xf32>
      %cst_34 = arith.constant dense<0.000000e+00> : vector<128x128xf32>
      %83 = tpu.matmul %82, %79, %cst_34 {dimension_numbers = #tpu.dot_dimension_numbers<[1], [0], [0], [1], [0, 0, 1, 1], [], []>} : vector<128x128xf32>, vector<128x128xf32>, vector<128x128xf32> -> vector<128x128xf32>
      %84 = arith.truncf %83 : vector<128x128xf32> to vector<128x128xbf16>
      %c0_35 = arith.constant 0 : index
      %c0_36 = arith.constant 0 : index
      %85 = vector.load %arg11[%c0_35, %c0_36] : memref<128x128xbf16, #tpu.memory_space<vmem>>, vector<128x128xbf16>
      tpu.vector_store %arg11[%c0_35, %c0_36], %84 {strides = array<i32>} : memref<128x128xbf16, #tpu.memory_space<vmem>>, vector<128x128xbf16>,
      %86 = arith.mulf %65, %77 : vector<1x128xf32>
      %87 = arith.subf %31, %86 : vector<1x128xf32>
      %c0_37 = arith.constant 0 : index
      %c0_38 = arith.constant 0 : index
      %88 = vector.load %arg12[%c0_37, %c0_38] : memref<1x128xf32, #tpu.memory_space<vmem>>, vector<1x128xf32>
      tpu.vector_store %arg12[%c0_37, %c0_38], %87 {strides = array<i32>} : memref<1x128xf32, #tpu.memory_space<vmem>>, vector<1x128xf32>,
    } else {
    }
    %c1_i32_6 = arith.constant 1 : i32
    %19 = arith.cmpi eq, %arg1, %c1_i32_6 : i32
    %20 = arith.cmpi slt, %arg2, %3 : i32
    %21 = arith.andi %19, %20 : i1
    %22 = arith.extui %21 : i1 to i32
    %c0_i32_7 = arith.constant 0 : i32
    %23 = arith.cmpi ne, %22, %c0_i32_7 : i32
    scf.if %23 {
      %c0_8 = arith.constant 0 : index
      %c0_9 = arith.constant 0 : index
      %24 = vector.load %arg4[%c0_8, %c0_9] : memref<16x128xbf16, #tpu.memory_space<vmem>>, vector<16x128xbf16>
      %c0_10 = arith.constant 0 : index
      %c0_11 = arith.constant 0 : index
      %25 = vector.load %arg11[%c0_10, %c0_11] : memref<128x128xbf16, #tpu.memory_space<vmem>>, vector<128x128xbf16>
      %cst = arith.constant dense<0.000000e+00> : vector<16x128xf32>
      %26 = tpu.matmul %24, %25, %cst {dimension_numbers = #tpu.dot_dimension_numbers<[1], [0], [0], [1], [0, 0, 1, 1], [], []>} : vector<16x128xbf16>, vector<128x128xbf16>, vector<16x128xf32> -> vector<16x128xf32>
      %c0_12 = arith.constant 0 : index
      %c0_13 = arith.constant 0 : index
      %27 = vector.load %arg12[%c0_12, %c0_13] : memref<1x128xf32, #tpu.memory_space<vmem>>, vector<1x128xf32>
      %28 = vector.broadcast %27 : vector<1x128xf32> to vector<16x128xf32>
      %29 = arith.addf %26, %28 : vector<16x128xf32>
      %30 = arith.truncf %29 : vector<16x128xf32> to vector<16x128xbf16>
      %c0_14 = arith.constant 0 : index
      %c0_15 = arith.constant 0 : index
      %31 = vector.load %arg8[%c0_14, %c0_15] : memref<16x128xbf16, #tpu.memory_space<vmem>>, vector<16x128xbf16>
      tpu.vector_store %arg8[%c0_14, %c0_15], %30 {strides = array<i32>} : memref<16x128xbf16, #tpu.memory_space<vmem>>, vector<16x128xbf16>,
    } else {
    }
    return
  }
  func.func @transform_0(%arg0: i32, %arg1: i32, %arg2: i32, %arg3: memref<3x2xi32, #tpu.memory_space<smem>>) -> (i32, i32) {
    %c2 = arith.constant 2 : index
    %0 = arith.index_cast %arg0 : i32 to index
    %1 = memref.load %arg3[%c2, %0] : memref<3x2xi32, #tpu.memory_space<smem>>
    %c1 = arith.constant 1 : index
    %2 = arith.index_cast %arg0 : i32 to index
    %3 = memref.load %arg3[%c1, %2] : memref<3x2xi32, #tpu.memory_space<smem>>
    %c1_i32 = arith.constant 1 : i32
    %4 = arith.subi %3, %c1_i32 : i32
    %5 = arith.minsi %arg2, %4 : i32
    %6 = arith.addi %1, %5 : i32
    %c0_i32 = arith.constant 0 : i32
    %c0_i32_0 = arith.constant 0 : i32
    return %6, %c0_i32 : i32, i32
  }
  func.func @transform_1(%arg0: i32, %arg1: i32, %arg2: i32, %arg3: memref<3x2xi32, #tpu.memory_space<smem>>) -> (i32, i32, i32) {
    %c0_i32 = arith.constant 0 : i32
    %c0_i32_0 = arith.constant 0 : i32
    %c0_i32_1 = arith.constant 0 : i32
    return %arg0, %c0_i32, %c0_i32_0 : i32, i32, i32
  }
  func.func @transform_2(%arg0: i32, %arg1: i32, %arg2: i32, %arg3: memref<3x2xi32, #tpu.memory_space<smem>>) -> (i32, i32, i32) {
    %c0_i32 = arith.constant 0 : i32
    %c0_i32_0 = arith.constant 0 : i32
    %c0_i32_1 = arith.constant 0 : i32
    return %arg0, %c0_i32, %c0_i32_0 : i32, i32, i32
  }
  func.func @transform_3(%arg0: i32, %arg1: i32, %arg2: i32, %arg3: memref<3x2xi32, #tpu.memory_space<smem>>) -> (i32, i32, i32) {
    %c0_i32 = arith.constant 0 : i32
    %c0_i32_0 = arith.constant 0 : i32
    %c0_i32_1 = arith.constant 0 : i32
    return %arg0, %c0_i32, %c0_i32_0 : i32, i32, i32
  }
  func.func @transform_4(%arg0: i32, %arg1: i32, %arg2: i32, %arg3: memref<3x2xi32, #tpu.memory_space<smem>>) -> (i32, i32) {
    %c2 = arith.constant 2 : index
    %0 = arith.index_cast %arg0 : i32 to index
    %1 = memref.load %arg3[%c2, %0] : memref<3x2xi32, #tpu.memory_space<smem>>
    %c1 = arith.constant 1 : index
    %2 = arith.index_cast %arg0 : i32 to index
    %3 = memref.load %arg3[%c1, %2] : memref<3x2xi32, #tpu.memory_space<smem>>
    %c1_i32 = arith.constant 1 : i32
    %4 = arith.subi %3, %c1_i32 : i32
    %5 = arith.minsi %arg2, %4 : i32
    %6 = arith.muli %arg1, %5 : i32
    %7 = arith.addi %1, %6 : i32
    %c0_i32 = arith.constant 0 : i32
    %c0_i32_0 = arith.constant 0 : i32
    return %7, %c0_i32 : i32, i32
  }
}

</mosaic_0001>

<llo_original>
// kernel: _student_core.1
$region0: #{_student_core.1}
  #allocation0 [shape = 'u32[]', space=smem, size = 0x4, offset = 0x4, fixed_abs, tag = 'smem constant byte address 0x4 - core index']
  #allocation1 [shape = 'u32[72,128]{1,0:T(1,128)}', space=vmem, size = 0x9000, scoped, tag = 'internal scratch']
  #allocation2 [shape = 'f32[1,128]{1,0:T(1,128)}', space=vmem, size = 0x200, scoped, tag = 'scratch operand']
  #allocation3 [shape = 'f32[128,128]{1,0:T(8,128)}', space=vmem, size = 0x10000, scoped, tag = 'scratch operand']
  #allocation4 [shape = 'bf16[128,128]{1,0:T(8,128)(2,1)}', space=vmem, size = 0x8000, scoped, tag = 'scratch operand']
  #allocation5 [shape = 'f32[1,128]{1,0:T(1,128)}', space=vmem, size = 0x200, scoped, tag = 'scratch operand']
  #allocation6 [shape = 's32[1]{0}', space=sflag, size = 0x4, scoped, tag = 'scoped memory for _student_core.1']
  #allocation7 [shape = 'u8[2048]{0}', space=smem, size = 0x800, scoped, tag = 'prefetched SMEM operand 0']
  %s0 = inlined_call_operand.vmem [shape: s32[3,2], index: 0, kind: input, shape index: {}]
  %s1 = inlined_call_operand.vmem [shape: bf16[32,128], index: 1, kind: input, shape index: {}]
  %s2 = inlined_call_operand.vmem [shape: bf16[2,128,128], index: 2, kind: input, shape index: {}]
  %s3 = inlined_call_operand.hbm [shape: bf16[2,128,128], index: 3, kind: input, shape index: {}]
  %s4 = inlined_call_operand.vmem [shape: f32[2,8,128], index: 4, kind: input, shape index: {}]
  %s5 = inlined_call_operand.vmem [shape: bf16[32,128], index: 5, kind: output, shape index: {}]
  %s6 = sld [smem:[#allocation0]]
  $region69: #{_student_core.1} parent=0
    _
  %s8 = ssub.s32 1, %s6
  %s9 = scalar_select 0, %s8, %s6
  %s11 = sshll.u32 %s0, 4
  %s12 = int_to_ptr.vmem [resolvable:$true] %s11
  %14 = dma.vmem_to_smem %s12, 64, [#allocation7], [#allocation6]
  %16 = dma.done [#allocation6], 64
  %17 = sfence
  $region1: #{_student_core.1} parent=0
    #allocation8 [shape = 'u8[65536]{0}', space=vmem, size = 0x10000, scoped, tag = 'input window, operand 3']
    #allocation9 [shape = 's32[2]{0}', space=sflag, size = 0x8, scoped, tag = 'scoped memory for _student_core.1']
    %18 = vsyncpa [#allocation9], 0
    %s19 = scalar_lea.sflag [#allocation9], 1
    %20 = vsyncpa %s19, 0
    loop: start=0, step=1, limit=6
    $region2: #{_student_core.1} parent=1 // loop_pre_header
      _
    $region3: #{_student_core.1} parent=1 // loop_header
      %s22 = sphi 0, %s26
      %p23 = scmp.ge.s32.totalorder %s22, 6
      %s29 = sphi 0, %s48
      %s30 = sphi 0, %s44
      %s31 = sphi 0, %s40
      %s32 = sphi 0, %s29
      %s33 = sphi 0, %s30
      %s34 = sphi 0, %s31
      %s35 = sphi 0, %s32
      %s36 = sphi 0, %s33
      %s37 = sphi 0, %s34
      %s83 = sphi 0, %s85
      %s86 = sphi 0, %s83
      %s87 = sphi 0, %s86
      %s103 = sphi 0, %s87
      %s109 = sphi 0, %s111
      %s112 = sphi 0, %s109
      %s113 = sphi 0, %s112
      %s129 = sphi 0, %s113
      %s135 = sphi 0, %s137
      %s138 = sphi 0, %s135
      %s139 = sphi 0, %s138
      %s155 = sphi 0, %s139
      %s161 = sphi 0, %s163
      %s164 = sphi 0, %s161
      %s165 = sphi 0, %s164
      %s181 = sphi 0, %s165
      %s221 = sphi 0, %s223
      %s224 = sphi 0, %s221
      %s225 = sphi 0, %s224
      %s241 = sphi 0, %s225
    $region4: #{_student_core.1} parent=1 // loop_header_branch
      %25 = sbr.rel (%p23) target = $region8
    $region5: #{_student_core.1} parent=1 // loop_body
      %s27 = ssub.s32 %s22, 1
      %s28 = ssub.s32 %s22, 2
      %s38 = sadd.s32 1, %s31
      %p39 = scmp.ge.s32.totalorder %s38, 1
      %s40 = scalar_select %p39, 0, %s38
      %s41 = sadd.s32 1, %s30
      %s42 = scalar_select %p39, %s41, %s30
      %p43 = scmp.ge.s32.totalorder %s42, 2
      %s44 = scalar_select %p43, 0, %s42
      %s45 = sadd.s32 1, %s29
      %s46 = scalar_select %p43, %s45, %s29
      %p47 = scmp.ge.s32.totalorder %s46, 2
      %s48 = scalar_select %p47, 0, %s46
      %s49 = sshra.s32 %s29, 7
      %s50 = sand.u32 %s29, 127
      %s51 = sadd.s32 %s49, 2
      %s52 = smul.u32 %s51, 128
      %s53 = sshra.s32 %s29, 7
      %s54 = sand.u32 %s29, 127
      %s55 = sadd.s32 %s52, %s54
      %s56 = sld [smem:[#allocation7 + %s55]]
      %s57 = sadd.s32 %s49, 1
      %s58 = smul.u32 %s57, 128
      %s59 = sadd.s32 %s58, %s54
      %s60 = sld [smem:[#allocation7 + %s59]]
      %s61 = ssub.s32 %s60, 1
      %p62 = scmp.lt.s32.totalorder %s31, %s61
      %s63 = scalar_select %p62, %s31, %s61
      %s64 = sadd.s32 %s56, %s63
      %s65 = sshra.s32 %s48, 7
      %s66 = sand.u32 %s48, 127
      %s67 = sadd.s32 %s65, 2
      %s68 = smul.u32 %s67, 128
      %s69 = sshra.s32 %s48, 7
      %s70 = sand.u32 %s48, 127
      %s71 = sadd.s32 %s68, %s70
      %s72 = sld [smem:[#allocation7 + %s71]]
      %s73 = sadd.s32 %s65, 1
      %s74 = smul.u32 %s73, 128
      %s75 = sadd.s32 %s74, %s70
      %s76 = sld [smem:[#allocation7 + %s75]]
      %s77 = ssub.s32 %s76, 1
      %p78 = scmp.lt.s32.totalorder %s40, %s77
      %s79 = scalar_select %p78, %s40, %s77
      %s80 = sadd.s32 %s72, %s79
      %s81 = ssub.s32 %s64, %s80
      %p82 = scmp.eq.s32.totalorder %s81, 0
      %s84 = sadd.s32 %s83, 1
      %s85 = scalar_select %p82, %s83, %s84
      %p88 = pneg %p82
      %p89 = scmp.eq.s32.totalorder %s22, 3
      %p90 = por %p88, %p89
      %p91 = scmp.ne.s32.totalorder %s83, %s86
      %p92 = scmp.eq.s32.totalorder %s22, 0
      %p93 = por %p91, %p92
      %p94 = scmp.ne.s32.totalorder %s83, %s86
      %p95 = scmp.eq.s32.totalorder %s27, 3
      %p96 = por %p94, %p95
      %p97 = scmp.ne.s32.totalorder %s86, %s87
      %p98 = scmp.eq.s32.totalorder %s27, 0
      %p99 = por %p97, %p98
      %p100 = scmp.ne.s32.totalorder %s86, %s87
      %p101 = scmp.eq.s32.totalorder %s28, 3
      %p102 = por %p100, %p101
      %p104 = scmp.ne.s32.totalorder %s87, %s103
      %p105 = scmp.eq.s32.totalorder %s28, 0
      %p106 = por %p104, %p105
      %s107 = ssub.s32 %s29, %s48
      %p108 = scmp.eq.s32.totalorder %s107, 0
      %s110 = sadd.s32 %s109, 1
      %s111 = scalar_select %p108, %s109, %s110
      %p114 = pneg %p108
      %p115 = scmp.eq.s32.totalorder %s22, 3
      %p116 = por %p114, %p115
      %p117 = scmp.ne.s32.totalorder %s109, %s112
      %p118 = scmp.eq.s32.totalorder %s22, 0
      %p119 = por %p117, %p118
      %p120 = scmp.ne.s32.totalorder %s109, %s112
      %p121 = scmp.eq.s32.totalorder %s27, 3
      %p122 = por %p120, %p121
      %p123 = scmp.ne.s32.totalorder %s112, %s113
      %p124 = scmp.eq.s32.totalorder %s27, 0
      %p125 = por %p123, %p124
      %p126 = scmp.ne.s32.totalorder %s112, %s113
      %p127 = scmp.eq.s32.totalorder %s28, 3
      %p128 = por %p126, %p127
      %p130 = scmp.ne.s32.totalorder %s113, %s129
      %p131 = scmp.eq.s32.totalorder %s28, 0
      %p132 = por %p130, %p131
      %s133 = ssub.s32 %s29, %s48
      %p134 = scmp.eq.s32.totalorder %s133, 0
      %s136 = sadd.s32 %s135, 1
      %s137 = scalar_select %p134, %s135, %s136
      %p140 = pneg %p134
      %p141 = scmp.eq.s32.totalorder %s22, 3
      %p142 = por %p140, %p141
      %p143 = scmp.ne.s32.totalorder %s135, %s138
      %p144 = scmp.eq.s32.totalorder %s22, 0
      %p145 = por %p143, %p144
      %p146 = scmp.ne.s32.totalorder %s135, %s138
      %p147 = scmp.eq.s32.totalorder %s27, 3
      %p148 = por %p146, %p147
      %p149 = scmp.ne.s32.totalorder %s138, %s139
      %p150 = scmp.eq.s32.totalorder %s27, 0
      %p151 = por %p149, %p150
      %p152 = scmp.ne.s32.totalorder %s138, %s139
      %p153 = scmp.eq.s32.totalorder %s28, 3
      %p154 = por %p152, %p153
      %p156 = scmp.ne.s32.totalorder %s139, %s155
      %p157 = scmp.eq.s32.totalorder %s28, 0
      %p158 = por %p156, %p157
      %s159 = ssub.s32 %s29, %s48
      %p160 = scmp.eq.s32.totalorder %s159, 0
      %s162 = sadd.s32 %s161, 1
      %s163 = scalar_select %p160, %s161, %s162
      %p166 = pneg %p160
      %p167 = scmp.eq.s32.totalorder %s22, 3
      %p168 = por %p166, %p167
      %p169 = scmp.ne.s32.totalorder %s161, %s164
      %p170 = scmp.eq.s32.totalorder %s22, 0
      %p171 = por %p169, %p170
      %p172 = scmp.ne.s32.totalorder %s161, %s164
      %p173 = scmp.eq.s32.totalorder %s27, 3
      %p174 = por %p172, %p173
      %p175 = scmp.ne.s32.totalorder %s164, %s165
      %p176 = scmp.eq.s32.totalorder %s27, 0
      %p177 = por %p175, %p176
      %p178 = scmp.ne.s32.totalorder %s164, %s165
      %p179 = scmp.eq.s32.totalorder %s28, 3
      %p180 = por %p178, %p179
      %p182 = scmp.ne.s32.totalorder %s165, %s181
      %p183 = scmp.eq.s32.totalorder %s28, 0
      %p184 = por %p182, %p183
      %s185 = sshra.s32 %s29, 7
      %s186 = sand.u32 %s29, 127
      %s187 = sadd.s32 %s185, 2
      %s188 = smul.u32 %s187, 128
      %s189 = sshra.s32 %s29, 7
      %s190 = sand.u32 %s29, 127
      %s191 = sadd.s32 %s188, %s190
      %s192 = sld [smem:[#allocation7 + %s191]]
      %s193 = sadd.s32 %s185, 1
      %s194 = smul.u32 %s193, 128
      %s195 = sadd.s32 %s194, %s190
      %s196 = sld [smem:[#allocation7 + %s195]]
      %s197 = ssub.s32 %s196, 1
      %p198 = scmp.lt.s32.totalorder %s31, %s197
      %s199 = scalar_select %p198, %s31, %s197
      %s200 = smul.u32 %s30, %s199
      %s201 = sadd.s32 %s192, %s200
      %s202 = sshra.s32 %s48, 7
      %s203 = sand.u32 %s48, 127
      %s204 = sadd.s32 %s202, 2
      %s205 = smul.u32 %s204, 128
      %s206 = sshra.s32 %s48, 7
      %s207 = sand.u32 %s48, 127
      %s208 = sadd.s32 %s205, %s207
      %s209 = sld [smem:[#allocation7 + %s208]]
      %s210 = sadd.s32 %s202, 1
      %s211 = smul.u32 %s210, 128
      %s212 = sadd.s32 %s211, %s207
      %s213 = sld [smem:[#allocation7 + %s212]]
      %s214 = ssub.s32 %s213, 1
      %p215 = scmp.lt.s32.totalorder %s40, %s214
      %s216 = scalar_select %p215, %s40, %s214
      %s217 = smul.u32 %s44, %s216
      %s218 = sadd.s32 %s209, %s217
      %s219 = ssub.s32 %s201, %s218
      %p220 = scmp.eq.s32.totalorder %s219, 0
      %s222 = sadd.s32 %s221, 1
      %s223 = scalar_select %p220, %s221, %s222
      %p226 = pneg %p220
      %p227 = scmp.eq.s32.totalorder %s22, 3
      %p228 = por %p226, %p227
      %p229 = scmp.ne.s32.totalorder %s221, %s224
      %p230 = scmp.eq.s32.totalorder %s22, 0
      %p231 = por %p229, %p230
      %p232 = scmp.ne.s32.totalorder %s221, %s224
      %p233 = scmp.eq.s32.totalorder %s27, 3
      %p234 = por %p232, %p233
      %p235 = scmp.ne.s32.totalorder %s224, %s225
      %p236 = scmp.eq.s32.totalorder %s27, 0
      %p237 = por %p235, %p236
      %p238 = scmp.ne.s32.totalorder %s224, %s225
      %p239 = scmp.eq.s32.totalorder %s28, 3
      %p240 = por %p238, %p239
      %p242 = scmp.ne.s32.totalorder %s225, %s241
      %p243 = scmp.eq.s32.totalorder %s28, 0
      %p244 = por %p242, %p243
      %p245 = scmp.le.s32.totalorder 1, %s22
      %p246 = scmp.lt.s32.totalorder %s22, 5
      %p247 = pnand %p245, %p246
      %p248 = pneg %p247
      // Predicated region
      $region9: #{_student_core.1} parent=5 // pred_check
        _
      $region10: #{_student_core.1} parent=5 // pred_check_branch
        %250 = sbr.rel (%p247) target = $region12
      $region11: #{_student_core.1} parent=5 // pred_region
        %s251 = ssub.s32 %s22, 1
      $region12: #{_student_core.1} parent=5 // pred_fallthru
        _
      %p252 = scmp.lt.s32.totalorder %s22, 4
      // Predicated region
      $region13: #{_student_core.1} parent=5 // pred_check
        %p253 = pneg %p252
      $region14: #{_student_core.1} parent=5 // pred_check_branch
        %255 = sbr.rel (%p253) target = $region16
      $region15: #{_student_core.1} parent=5 // pred_region
        // Predicated region
        $region17: #{_student_core.1} parent=15 // pred_check
          %p256 = pneg %p93
        $region18: #{_student_core.1} parent=15 // pred_check_branch
          %258 = sbr.rel (%p256) target = $region20
        $region19: #{_student_core.1} parent=15 // pred_region
          %s259 = sshra.s32 %s29, 7
          %s260 = sand.u32 %s29, 127
          %s261 = sadd.s32 %s259, 2
          %s262 = smul.u32 %s261, 128
          %s263 = sshra.s32 %s29, 7
          %s264 = sand.u32 %s29, 127
          %s265 = sadd.s32 %s262, %s264
          %s266 = sld [smem:[#allocation7 + %s265]]
          %s267 = sadd.s32 %s259, 1
          %s268 = smul.u32 %s267, 128
          %s269 = sadd.s32 %s268, %s264
          %s270 = sld [smem:[#allocation7 + %s269]]
          %s271 = ssub.s32 %s270, 1
          %p272 = scmp.lt.s32.totalorder %s31, %s271
          %s273 = scalar_select %p272, %s31, %s271
          %s274 = sadd.s32 %s266, %s273
          %s275 = smul.u32 2, %s274
          %p276 = scmp.lt.s32.totalorder %s275, 3
          %s277 = scalar_select %p276, %s275, 3
          %s278 = smul.addr %s277, 4
          %s279 = scalar_lea.vmem %s1, %s278
          %s280 = sshra.s32 %s29, 7
          %s281 = sand.u32 %s29, 127
          %s282 = sadd.s32 %s280, 2
          %s283 = smul.u32 %s282, 128
          %s284 = sshra.s32 %s29, 7
          %s285 = sand.u32 %s29, 127
          %s286 = sadd.s32 %s283, %s285
          %s287 = sld [smem:[#allocation7 + %s286]]
          %s288 = sadd.s32 %s280, 1
          %s289 = smul.u32 %s288, 128
          %s290 = sadd.s32 %s289, %s285
          %s291 = sld [smem:[#allocation7 + %s290]]
          %s292 = ssub.s32 %s291, 1
          %p293 = scmp.lt.s32.totalorder %s31, %s292
          %s294 = scalar_select %p293, %s31, %s292
          %s295 = sadd.s32 %s287, %s294
          %s296 = smul.u32 2, %s295
        $region20: #{_student_core.1} parent=15 // pred_fallthru
          _
        // Predicated region
        $region21: #{_student_core.1} parent=15 // pred_check
          %p297 = pneg %p119
        $region22: #{_student_core.1} parent=15 // pred_check_branch
          %299 = sbr.rel (%p297) target = $region24
        $region23: #{_student_core.1} parent=15 // pred_region
          %p300 = scmp.lt.s32.totalorder %s29, 1
          %s301 = scalar_select %p300, %s29, 1
          %s302 = smul.addr %s301, 16
          %s303 = smul.addr %s302, 4
          %s304 = scalar_lea.vmem %s2, %s303
        $region24: #{_student_core.1} parent=15 // pred_fallthru
          _
        // Predicated region
        $region25: #{_student_core.1} parent=15 // pred_check
          %p305 = pneg %p145
        $region26: #{_student_core.1} parent=15 // pred_check_branch
          %307 = sbr.rel (%p305) target = $region28
        $region27: #{_student_core.1} parent=15 // pred_region
          %s308 = sand.u32 %s135, 1
          %s309 = scalar_lea.sflag [#allocation9], %s308
          %s310 = sand.u32 %s135, 1
          %s311 = smul.addr %s310, 64
          %s312 = scalar_lea.vmem [#allocation8], %s311
          %314 = vsyncadd %s309, 0
          %s315 = smul.addr %s29, 16
          %s316 = smul.addr %s315, 4
          %s317 = scalar_lea.hbm %s3, %s316
          %s318 = sshll.u32 %s317, 4
          %s319 = int_to_ptr.hbm [resolvable:$true] %s318
          %s320 = sshll.u32 %s312, 4
          %s321 = int_to_ptr.vmem [resolvable:$true] %s320
          %326 = dma.hbm_to_vmem [thread:$0]  %s319, 1024, %s321, %s309, 64, 64, 4
        $region28: #{_student_core.1} parent=15 // pred_fallthru
          _
        // Predicated region
        $region29: #{_student_core.1} parent=15 // pred_check
          %p327 = pneg %p171
        $region30: #{_student_core.1} parent=15 // pred_check_branch
          %329 = sbr.rel (%p327) target = $region32
        $region31: #{_student_core.1} parent=15 // pred_region
          %p330 = scmp.lt.s32.totalorder %s29, 1
          %s331 = scalar_select %p330, %s29, 1
          %s332 = smul.addr %s331, 8
          %s333 = scalar_lea.vmem %s4, %s332
        $region32: #{_student_core.1} parent=15 // pred_fallthru
          _
      $region16: #{_student_core.1} parent=5 // pred_fallthru
        _
      %p334 = scmp.le.s32.totalorder 1, %s22
      %p335 = scmp.lt.s32.totalorder %s22, 5
      %p336 = pnand %p334, %p335
      %p337 = pneg %p336
      // Predicated region
      $region33: #{_student_core.1} parent=5 // pred_check
        _
      $region34: #{_student_core.1} parent=5 // pred_check_branch
        %339 = sbr.rel (%p336) target = $region36
      $region35: #{_student_core.1} parent=5 // pred_region
        %s340 = ssub.s32 %s22, 1
        %s341 = sand.u32 %s138, 1
        %s342 = scalar_lea.sflag [#allocation9], %s341
        %s343 = sand.u32 %s138, 1
        %s344 = smul.addr %s343, 64
        %s345 = scalar_lea.vmem [#allocation8], %s344
        // Predicated region
        $region37: #{_student_core.1} parent=35 // pred_check
          %p346 = pneg %p151
        $region38: #{_student_core.1} parent=35 // pred_check_branch
          %348 = sbr.rel (%p346) target = $region40
        $region39: #{_student_core.1} parent=35 // pred_region
          %350 = dma.done %s342, 1024
        $region40: #{_student_core.1} parent=35 // pred_fallthru
          _
        %s351 = sshra.s32 %s32, 7
        %s352 = sand.u32 %s32, 127
        %s353 = sadd.s32 %s351, 2
        %s354 = smul.u32 %s353, 128
        %s355 = sshra.s32 %s32, 7
        %s356 = sand.u32 %s32, 127
        %s357 = sadd.s32 %s354, %s356
        %s358 = sld [smem:[#allocation7 + %s357]]
        %s359 = sadd.s32 %s351, 1
        %s360 = smul.u32 %s359, 128
        %s361 = sadd.s32 %s360, %s356
        %s362 = sld [smem:[#allocation7 + %s361]]
        %s363 = ssub.s32 %s362, 1
        %p364 = scmp.lt.s32.totalorder %s34, %s363
        %s365 = scalar_select %p364, %s34, %s363
        %s366 = sadd.s32 %s358, %s365
        %s367 = smul.u32 2, %s366
        %p368 = scmp.lt.s32.totalorder %s367, 3
        %s369 = scalar_select %p368, %s367, 3
        %s370 = smul.addr %s369, 4
        %s371 = scalar_lea.vmem %s1, %s370
        %p372 = pneg %p99
        %p373 = pneg %p96
        %p374 = scmp.lt.s32.totalorder %s32, 1
        %s375 = scalar_select %p374, %s32, 1
        %s376 = smul.addr %s375, 16
        %s377 = smul.addr %s376, 4
        %s378 = scalar_lea.vmem %s2, %s377
        %p379 = pneg %p125
        %p380 = pneg %p122
        %s381 = sand.u32 %s138, 1
        %s382 = scalar_lea.sflag [#allocation9], %s381
        %s383 = sand.u32 %s138, 1
        %s384 = smul.addr %s383, 64
        %s385 = scalar_lea.vmem [#allocation8], %s384
        %p386 = pneg %p151
        %p387 = pneg %p148
        %p388 = scmp.lt.s32.totalorder %s32, 1
        %s389 = scalar_select %p388, %s32, 1
        %s390 = smul.addr %s389, 8
        %s391 = scalar_lea.vmem %s4, %s390
        %p392 = pneg %p177
        %p393 = pneg %p174
        %p394 = pneg %p237
        %p395 = pneg %p234
        %s396 = sshra.s32 %s32, 7
        %s397 = sand.u32 %s32, 127
        %s398 = sadd.s32 %s396, 2
        %s399 = smul.u32 %s398, 128
        %s400 = sshra.s32 %s32, 7
        %s401 = sand.u32 %s32, 127
        %s402 = sadd.s32 %s399, %s401
        %s403 = sld [smem:[#allocation7 + %s402]]
        %s404 = sadd.s32 %s396, 1
        %s405 = smul.u32 %s404, 128
        %s406 = sadd.s32 %s405, %s401
        %s407 = sld [smem:[#allocation7 + %s406]]
        %s408 = ssub.s32 %s407, 1
        %p409 = scmp.lt.s32.totalorder %s34, %s408
        %s410 = scalar_select %p409, %s34, %s408
        %s411 = smul.u32 %s33, %s410
        %s412 = sadd.s32 %s403, %s411
        %s413 = smul.u32 2, %s412
        %p414 = scmp.lt.s32.totalorder %s413, 3
        %s415 = scalar_select %p414, %s413, 3
        %s416 = smul.addr %s415, 4
        %s417 = scalar_lea.vmem %s5, %s416
        %s418 = sshra.s32 %s32, 7
        %s419 = sand.u32 %s32, 127
        %s420 = sadd.s32 %s418, 2
        %s421 = smul.u32 %s420, 128
        %s422 = sshra.s32 %s32, 7
        %s423 = sand.u32 %s32, 127
        %s424 = sadd.s32 %s421, %s423
        %s425 = sld [smem:[#allocation7 + %s424]]
        %s426 = sadd.s32 %s418, 1
        %s427 = smul.u32 %s426, 128
        %s428 = sadd.s32 %s427, %s423
        %s429 = sld [smem:[#allocation7 + %s428]]
        %s430 = ssub.s32 %s429, 1
        %p431 = scmp.lt.s32.totalorder %s34, %s430
        %s432 = scalar_select %p431, %s34, %s430
        %s433 = sadd.s32 %s425, %s432
        %s434 = smul.u32 2, %s433
        %p435 = scmp.lt.s32.totalorder %s434, 3
        %s436 = scalar_select %p435, %s434, 3
        %s437 = smul.addr %s436, 4
        %s438 = scalar_lea.vmem %s1, %s437
        %s439 = sshra.s32 %s32, 7
        %s440 = sand.u32 %s32, 127
        %s441 = sadd.s32 %s439, 2
        %s442 = smul.u32 %s441, 128
        %s443 = sshra.s32 %s32, 7
        %s444 = sand.u32 %s32, 127
        %s445 = sadd.s32 %s442, %s444
        %s446 = sld [smem:[#allocation7 + %s445]]
        %s447 = sadd.s32 %s439, 1
        %s448 = smul.u32 %s447, 128
        %s449 = sadd.s32 %s448, %s444
        %s450 = sld [smem:[#allocation7 + %s449]]
        %s451 = ssub.s32 %s450, 1
        %p452 = scmp.lt.s32.totalorder %s34, %s451
        %s453 = scalar_select %p452, %s34, %s451
        %s454 = sadd.s32 %s446, %s453
        %s455 = smul.u32 2, %s454
        %p456 = scmp.lt.s32.totalorder %s32, 1
        %s457 = scalar_select %p456, %s32, 1
        %s458 = smul.addr %s457, 16
        %s459 = smul.addr %s458, 4
        %s460 = scalar_lea.vmem %s2, %s459
        %p461 = scmp.lt.s32.totalorder %s32, 1
        %s462 = scalar_select %p461, %s32, 1
        %s463 = smul.addr %s462, 8
        %s464 = scalar_lea.vmem %s4, %s463
        %s465 = sshra.s32 %s32, 7
        %s466 = sand.u32 %s32, 127
        %s467 = sadd.s32 %s465, 2
        %s468 = smul.u32 %s467, 128
        %s469 = sshra.s32 %s32, 7
        %s470 = sand.u32 %s32, 127
        %s471 = sadd.s32 %s468, %s470
        %s472 = sld [smem:[#allocation7 + %s471]]
        %s473 = sadd.s32 %s465, 1
        %s474 = smul.u32 %s473, 128
        %s475 = sadd.s32 %s474, %s470
        %s476 = sld [smem:[#allocation7 + %s475]]
        %s477 = ssub.s32 %s476, 1
        %p478 = scmp.lt.s32.totalorder %s34, %s477
        %s479 = scalar_select %p478, %s34, %s477
        %s480 = smul.u32 %s33, %s479
        %s481 = sadd.s32 %s472, %s480
        %s482 = smul.u32 2, %s481
        %p483 = scmp.lt.s32.totalorder %s482, 3
        %s484 = scalar_select %p483, %s482, 3
        %s485 = smul.addr %s484, 4
        %s486 = scalar_lea.vmem %s5, %s485
        %s487 = sshra.s32 %s32, 7
        %s488 = sand.u32 %s32, 127
        %s489 = sadd.s32 %s487, 2
        %s490 = smul.u32 %s489, 128
        %s491 = sshra.s32 %s32, 7
        %s492 = sand.u32 %s32, 127
        %s493 = sadd.s32 %s490, %s492
        %s494 = sld [smem:[#allocation7 + %s493]]
        %s495 = sadd.s32 %s487, 1
        %s496 = smul.u32 %s495, 128
        %s497 = sadd.s32 %s496, %s492
        %s498 = sld [smem:[#allocation7 + %s497]]
        %s499 = ssub.s32 %s498, 1
        %p500 = scmp.lt.s32.totalorder %s34, %s499
        %s501 = scalar_select %p500, %s34, %s499
        %s502 = smul.u32 %s33, %s501
        %s503 = sadd.s32 %s494, %s502
        %s504 = smul.u32 2, %s503
        %s505 = sld [smem:[#allocation7 + %s32]]
        %s506 = sshra.s32 %s32, 7
        %s507 = sand.u32 %s32, 127
        %s508 = sadd.s32 %s506, 1
        %s509 = smul.u32 %s508, 128
        %s510 = sshra.s32 %s32, 7
        %s511 = sand.u32 %s32, 127
        %s512 = sadd.s32 %s509, %s511
        %s513 = sld [smem:[#allocation7 + %s512]]
        %p514 = scmp.eq.s32.totalorder %s33, 0
        %p515 = scmp.eq.s32.totalorder %s34, 0
        %p516 = pnand %p514, %p515
        %p517 = pneg %p516
        // Predicated region
        $region41: #{_student_core.1} parent=35 // pred_check
          _
        $region42: #{_student_core.1} parent=35 // pred_check_branch
          %519 = sbr.rel (%p516) target = $region44
        $region43: #{_student_core.1} parent=35 // pred_region
          %520 = vst [vmem:[#allocation2] sm:$0x1] 0.0
          %521 = vst [vmem:[#allocation3] sm:$0xff] 0.0
          %522 = vst [vmem:[#allocation3 + $0x8] sm:$0xff] 0.0
          %523 = vst [vmem:[#allocation3 + $0x10] sm:$0xff] 0.0
          %524 = vst [vmem:[#allocation3 + $0x18] sm:$0xff] 0.0
          %525 = vst [vmem:[#allocation3 + $0x20] sm:$0xff] 0.0
          %526 = vst [vmem:[#allocation3 + $0x28] sm:$0xff] 0.0
          %527 = vst [vmem:[#allocation3 + $0x30] sm:$0xff] 0.0
          %528 = vst [vmem:[#allocation3 + $0x38] sm:$0xff] 0.0
          %529 = vst [vmem:[#allocation3 + $0x40] sm:$0xff] 0.0
          %530 = vst [vmem:[#allocation3 + $0x48] sm:$0xff] 0.0
          %531 = vst [vmem:[#allocation3 + $0x50] sm:$0xff] 0.0
          %532 = vst [vmem:[#allocation3 + $0x58] sm:$0xff] 0.0
          %533 = vst [vmem:[#allocation3 + $0x60] sm:$0xff] 0.0
          %534 = vst [vmem:[#allocation3 + $0x68] sm:$0xff] 0.0
          %535 = vst [vmem:[#allocation3 + $0x70] sm:$0xff] 0.0
          %536 = vst [vmem:[#allocation3 + $0x78] sm:$0xff] 0.0
        $region44: #{_student_core.1} parent=35 // pred_fallthru
          _
        %p537 = scmp.lt.s32.totalorder %s34, %s513
        %p538 = pnand %p514, %p537
        %p539 = pneg %p538
        // Predicated region
        $region45: #{_student_core.1} parent=35 // pred_check
          _
        $region46: #{_student_core.1} parent=35 // pred_check_branch
          %541 = sbr.rel (%p538) target = $region48
        $region47: #{_student_core.1} parent=35 // pred_region
          %v542 = vld [vmem:[%s438] sm:$0xf]
          %v543 = vld [vmem:[%s438 + $0x4] sm:$0xf]
          %v544 = vld [vmem:[%s460] sm:$0xf]
          %v545 = vld [vmem:[%s460 + $0x4] sm:$0xf]
          %v546 = vld [vmem:[%s460 + $0x8] sm:$0xf]
          %v547 = vld [vmem:[%s460 + $0xc] sm:$0xf]
          %v548 = vld [vmem:[%s460 + $0x10] sm:$0xf]
          %v549 = vld [vmem:[%s460 + $0x14] sm:$0xf]
          %v550 = vld [vmem:[%s460 + $0x18] sm:$0xf]
          %v551 = vld [vmem:[%s460 + $0x1c] sm:$0xf]
          %v552 = vld [vmem:[%s460 + $0x20] sm:$0xf]
          %v553 = vld [vmem:[%s460 + $0x24] sm:$0xf]
          %v554 = vld [vmem:[%s460 + $0x28] sm:$0xf]
          %v555 = vld [vmem:[%s460 + $0x2c] sm:$0xf]
          %v556 = vld [vmem:[%s460 + $0x30] sm:$0xf]
          %v557 = vld [vmem:[%s460 + $0x34] sm:$0xf]
          %v558 = vld [vmem:[%s460 + $0x38] sm:$0xf]
          %v559 = vld [vmem:[%s460 + $0x3c] sm:$0xf]
          %v562 = vunpack.c.l.b16 %v542
          %v563 = vunpack.c.l.b16 %v543
          %v564 = vpack.c.b16 %v563, %v562
          %v582 = vunpack.c.l.b16 %v544
          %v583 = vunpack.c.l.b16 %v545
          %v584 = vunpack.c.l.b16 %v546
          %v585 = vunpack.c.l.b16 %v547
          %v586 = vunpack.c.l.b16 %v548
          %v587 = vunpack.c.l.b16 %v549
          %v588 = vunpack.c.l.b16 %v550
          %v589 = vunpack.c.l.b16 %v551
          %v590 = vunpack.c.l.b16 %v552
          %v591 = vunpack.c.l.b16 %v553
          %v592 = vunpack.c.l.b16 %v554
          %v593 = vunpack.c.l.b16 %v555
          %v594 = vunpack.c.l.b16 %v556
          %v595 = vunpack.c.l.b16 %v557
          %v596 = vunpack.c.l.b16 %v558
          %v597 = vunpack.c.l.b16 %v559
          %v598 = vpack.c.b16 %v583, %v582
          %v599 = vpack.c.b16 %v585, %v584
          %v600 = vpack.c.b16 %v587, %v586
          %v601 = vpack.c.b16 %v589, %v588
          %v602 = vpack.c.b16 %v591, %v590
          %v603 = vpack.c.b16 %v593, %v592
          %v604 = vpack.c.b16 %v595, %v594
          %v605 = vpack.c.b16 %v597, %v596
          %614 = vmatpush.bf16.msra.mxu0 %v605
          %615 = vmatpush.bf16.msra.mxu0 %v604
          %616 = vmatpush.bf16.msra.mxu0 %v603
          %617 = vmatpush.bf16.msra.mxu0 %v602
          %618 = vmatpush.bf16.msra.mxu0 %v601
          %619 = vmatpush.bf16.msra.mxu0 %v600
          %620 = vmatpush.bf16.msra.mxu0 %v599
          %621 = vmatpush.bf16.msra.mxu0 %v598
          %622 = vmatmul.bf16.gmra.mxu0 %v564
          %v623 = vpop.f32.mrf.mxu0
          %v624 = vadd.f32 0.0, %v623
          %v625 = vpop.f32.mrf.mxu0
          %v626 = vadd.f32 0.0, %v625
          %627 = vdwg.mxu0
          %v628 = vld [vmem:[#allocation2] sm:$0x1]
          %v629 = vadd.f32 %v624, %v626
          %v630 = vrot.slane %v629, 4
          %v631 = vadd.f32 %v629, %v630
          %v632 = vrot.slane %v631, 2
          %v633 = vadd.f32 %v631, %v632
          %v634 = vrot.slane %v633, 1
          %v635 = vadd.f32 %v633, %v634
          %v636 = vadd.f32 %v628, %v635
          %637 = vst [vmem:[#allocation2] sm:$0x1] %v636
          %v638 = vld [vmem:[#allocation3] sm:$0xff]
          %v639 = vld [vmem:[#allocation3 + $0x8] sm:$0xff]
          %v640 = vld [vmem:[#allocation3 + $0x10] sm:$0xff]
          %v641 = vld [vmem:[#allocation3 + $0x18] sm:$0xff]
          %v642 = vld [vmem:[#allocation3 + $0x20] sm:$0xff]
          %v643 = vld [vmem:[#allocation3 + $0x28] sm:$0xff]
          %v644 = vld [vmem:[#allocation3 + $0x30] sm:$0xff]
          %v645 = vld [vmem:[#allocation3 + $0x38] sm:$0xff]
          %v646 = vld [vmem:[#allocation3 + $0x40] sm:$0xff]
          %v647 = vld [vmem:[#allocation3 + $0x48] sm:$0xff]
          %v648 = vld [vmem:[#allocation3 + $0x50] sm:$0xff]
          %v649 = vld [vmem:[#allocation3 + $0x58] sm:$0xff]
          %v650 = vld [vmem:[#allocation3 + $0x60] sm:$0xff]
          %v651 = vld [vmem:[#allocation3 + $0x68] sm:$0xff]
          %v652 = vld [vmem:[#allocation3 + $0x70] sm:$0xff]
          %v653 = vld [vmem:[#allocation3 + $0x78] sm:$0xff]
          %654 = vxpose.xlu0.b32.start [1/16] %v624, 128
          %655 = vxpose.xlu0.b32.cont [2/16] %v626, 128
          %656 = vxpose.xlu0.b32.cont [3/16] 0.0, 128
          %657 = vxpose.xlu0.b32.cont [4/16] 0.0, 128
          %658 = vxpose.xlu0.b32.cont [5/16] 0.0, 128
          %659 = vxpose.xlu0.b32.cont [6/16] 0.0, 128
          %660 = vxpose.xlu0.b32.cont [7/16] 0.0, 128
          %661 = vxpose.xlu0.b32.cont [8/16] 0.0, 128
          %662 = vxpose.xlu0.b32.cont [9/16] 0.0, 128
          %663 = vxpose.xlu0.b32.cont [10/16] 0.0, 128
          %664 = vxpose.xlu0.b32.cont [11/16] 0.0, 128
          %665 = vxpose.xlu0.b32.cont [12/16] 0.0, 128
          %666 = vxpose.xlu0.b32.cont [13/16] 0.0, 128
          %667 = vxpose.xlu0.b32.cont [14/16] 0.0, 128
          %668 = vxpose.xlu0.b32.cont [15/16] 0.0, 128
          %669 = vxpose.xlu0.b32.end [16/16] 0.0, 128
          %v670 = vpop.trf.xlu0
          %v671 = vpop.trf.xlu0
          %v672 = vpop.trf.xlu0
          %v673 = vpop.trf.xlu0
          %v674 = vpop.trf.xlu0
          %v675 = vpop.trf.xlu0
          %v676 = vpop.trf.xlu0
          %v677 = vpop.trf.xlu0
          %v678 = vpop.trf.xlu0
          %v679 = vpop.trf.xlu0
          %v680 = vpop.trf.xlu0
          %v681 = vpop.trf.xlu0
          %v682 = vpop.trf.xlu0
          %v683 = vpop.trf.xlu0
          %v684 = vpop.trf.xlu0
          %v685 = vpop.trf.xlu0
          %vm686 = vcmask 130048
          %v688 = vsel %vm686, %v670, 0
          %v691 = vsel %vm686, %v671, 0
          %v694 = vsel %vm686, %v672, 0
          %v697 = vsel %vm686, %v673, 0
          %v700 = vsel %vm686, %v674, 0
          %v703 = vsel %vm686, %v675, 0
          %v706 = vsel %vm686, %v676, 0
          %v709 = vsel %vm686, %v677, 0
          %v712 = vsel %vm686, %v678, 0
          %v715 = vsel %vm686, %v679, 0
          %v718 = vsel %vm686, %v680, 0
          %v721 = vsel %vm686, %v681, 0
          %v724 = vsel %vm686, %v682, 0
          %v727 = vsel %vm686, %v683, 0
          %v730 = vsel %vm686, %v684, 0
          %v733 = vsel %vm686, %v685, 0
          %735 = vmatpush.msra.mxu0 0.0
          %736 = vmatpush.msra.mxu0 0.0
          %737 = vmatpush.msra.mxu0 0.0
          %738 = vmatpush.msra.mxu0 0.0
          %739 = vmatpush.msra.mxu0 0.0
          %740 = vmatpush.msra.mxu0 0.0
          %741 = vmatpush.msra.mxu0 0.0
          %742 = vmatpush.msra.mxu0 0.0
          %743 = vmatpush.msra.mxu0 0.0
          %744 = vmatpush.msra.mxu0 0.0
          %745 = vmatpush.msra.mxu0 0.0
          %746 = vmatpush.msra.mxu0 0.0
          %747 = vmatpush.msra.mxu0 0.0
          %748 = vmatpush.msra.mxu0 0.0
          %749 = vmatpush.msra.mxu0 %v626
          %750 = vmatpush.msra.mxu0 %v624
          %751 = vmatmul.f32.gmra.mxu0 %v688
          %v752 = vpop.f32.mrf.mxu0
          %v753 = vadd.f32 0.0, %v752
          %754 = vmatmul.f32.gmra.mxu0 %v691
          %v755 = vpop.f32.mrf.mxu0
          %v756 = vadd.f32 0.0, %v755
          %757 = vmatmul.f32.gmra.mxu0 %v694
          %v758 = vpop.f32.mrf.mxu0
          %v759 = vadd.f32 0.0, %v758
          %760 = vmatmul.f32.gmra.mxu0 %v697
          %v761 = vpop.f32.mrf.mxu0
          %v762 = vadd.f32 0.0, %v761
          %763 = vmatmul.f32.gmra.mxu0 %v700
          %v764 = vpop.f32.mrf.mxu0
          %v765 = vadd.f32 0.0, %v764
          %766 = vmatmul.f32.gmra.mxu0 %v703
          %v767 = vpop.f32.mrf.mxu0
          %v768 = vadd.f32 0.0, %v767
          %769 = vmatmul.f32.gmra.mxu0 %v706
          %v770 = vpop.f32.mrf.mxu0
          %v771 = vadd.f32 0.0, %v770
          %772 = vmatmul.f32.gmra.mxu0 %v709
          %v773 = vpop.f32.mrf.mxu0
          %v774 = vadd.f32 0.0, %v773
          %775 = vmatmul.f32.gmra.mxu0 %v712
          %v776 = vpop.f32.mrf.mxu0
          %v777 = vadd.f32 0.0, %v776
          %778 = vmatmul.f32.gmra.mxu0 %v715
          %v779 = vpop.f32.mrf.mxu0
          %v780 = vadd.f32 0.0, %v779
          %781 = vmatmul.f32.gmra.mxu0 %v718
          %v782 = vpop.f32.mrf.mxu0
          %v783 = vadd.f32 0.0, %v782
          %784 = vmatmul.f32.gmra.mxu0 %v721
          %v785 = vpop.f32.mrf.mxu0
          %v786 = vadd.f32 0.0, %v785
          %787 = vmatmul.f32.gmra.mxu0 %v724
          %v788 = vpop.f32.mrf.mxu0
          %v789 = vadd.f32 0.0, %v788
          %790 = vmatmul.f32.gmra.mxu0 %v727
          %v791 = vpop.f32.mrf.mxu0
          %v792 = vadd.f32 0.0, %v791
          %793 = vmatmul.f32.gmra.mxu0 %v730
          %v794 = vpop.f32.mrf.mxu0
          %v795 = vadd.f32 0.0, %v794
          %796 = vmatmul.f32.gmra.mxu0 %v733
          %v797 = vpop.f32.mrf.mxu0
          %v798 = vadd.f32 0.0, %v797
          %799 = vdwg.mxu0
          %v800 = vadd.f32 %v638, %v753
          %v801 = vadd.f32 %v639, %v756
          %v802 = vadd.f32 %v640, %v759
          %v803 = vadd.f32 %v641, %v762
          %v804 = vadd.f32 %v642, %v765
          %v805 = vadd.f32 %v643, %v768
          %v806 = vadd.f32 %v644, %v771
          %v807 = vadd.f32 %v645, %v774
          %v808 = vadd.f32 %v646, %v777
          %v809 = vadd.f32 %v647, %v780
          %v810 = vadd.f32 %v648, %v783
          %v811 = vadd.f32 %v649, %v786
          %v812 = vadd.f32 %v650, %v789
          %v813 = vadd.f32 %v651, %v792
          %v814 = vadd.f32 %v652, %v795
          %v815 = vadd.f32 %v653, %v798
          %816 = vst [vmem:[#allocation3] sm:$0xff] %v800
          %817 = vst [vmem:[#allocation3 + $0x8] sm:$0xff] %v801
          %818 = vst [vmem:[#allocation3 + $0x10] sm:$0xff] %v802
          %819 = vst [vmem:[#allocation3 + $0x18] sm:$0xff] %v803
          %820 = vst [vmem:[#allocation3 + $0x20] sm:$0xff] %v804
          %821 = vst [vmem:[#allocation3 + $0x28] sm:$0xff] %v805
          %822 = vst [vmem:[#allocation3 + $0x30] sm:$0xff] %v806
          %823 = vst [vmem:[#allocation3 + $0x38] sm:$0xff] %v807
          %824 = vst [vmem:[#allocation3 + $0x40] sm:$0xff] %v808
          %825 = vst [vmem:[#allocation3 + $0x48] sm:$0xff] %v809
          %826 = vst [vmem:[#allocation3 + $0x50] sm:$0xff] %v810
          %827 = vst [vmem:[#allocation3 + $0x58] sm:$0xff] %v811
          %828 = vst [vmem:[#allocation3 + $0x60] sm:$0xff] %v812
          %829 = vst [vmem:[#allocation3 + $0x68] sm:$0xff] %v813
          %830 = vst [vmem:[#allocation3 + $0x70] sm:$0xff] %v814
          %831 = vst [vmem:[#allocation3 + $0x78] sm:$0xff] %v815
        $region48: #{_student_core.1} parent=35 // pred_fallthru
          _
        %p832 = scmp.eq.s32.totalorder %s33, 1
        %p833 = pnand %p832, %p515
        %p834 = pneg %p833
        // Predicated region
        $region49: #{_student_core.1} parent=35 // pred_check
          _
        $region50: #{_student_core.1} parent=35 // pred_check_branch
          %836 = sbr.rel (%p833) target = $region52
        $region51: #{_student_core.1} parent=35 // pred_region
          %p837 = scmp.gt.s32.totalorder %s505, 1
          %s838 = scalar_select %p837, %s505, 1
          %s839 = scvt.s32.f32 %s838
          %v840 = vstv %s839
          %v841 = vrcp.pop %v840
          %v842 = vmul.f32 %v840, %v841
          %v843 = vsub.f32 1.0, %v842
          %v844 = vmul.f32 %v841, %v843
          %v845 = vadd.f32 %v841, %v844
          %vm846 = vweird.f32 %v840
          %vm847 = vweird.f32 %v841
          %vm848 = vmor %vm846, %vm847
          %v849 = vsel %vm848, %v841, %v845
          %v850 = vand.u32 2147483647, %v840
          %vm851 = vcmp.eq.f32.partialorder %v850, 8.507059e+37
          %v852 = vand.u32 %v840, 2147483648
          %v853 = vor.u32 1.1754944e-38, %v852
          %v854 = vsel %vm851, %v853, %v849
          %s855 = vtos %v854
          %v856 = vld [vmem:[%s464] sm:$0xff]
          %v857 = vld [vmem:[%s345] sm:$0xf]
          %v858 = vld [vmem:[%s345 + $0x4] sm:$0xf]
          %v859 = vld [vmem:[%s345 + $0x8] sm:$0xf]
          %v860 = vld [vmem:[%s345 + $0xc] sm:$0xf]
          %v861 = vld [vmem:[%s345 + $0x10] sm:$0xf]
          %v862 = vld [vmem:[%s345 + $0x14] sm:$0xf]
          %v863 = vld [vmem:[%s345 + $0x18] sm:$0xf]
          %v864 = vld [vmem:[%s345 + $0x1c] sm:$0xf]
          %v865 = vld [vmem:[%s345 + $0x20] sm:$0xf]
          %v866 = vld [vmem:[%s345 + $0x24] sm:$0xf]
          %v867 = vld [vmem:[%s345 + $0x28] sm:$0xf]
          %v868 = vld [vmem:[%s345 + $0x2c] sm:$0xf]
          %v869 = vld [vmem:[%s345 + $0x30] sm:$0xf]
          %v870 = vld [vmem:[%s345 + $0x34] sm:$0xf]
          %v871 = vld [vmem:[%s345 + $0x38] sm:$0xf]
          %v872 = vld [vmem:[%s345 + $0x3c] sm:$0xf]
          %v873 = vunpack.c.l.bf16 %v857
          %v874 = vunpack.c.l.bf16 %v858
          %v875 = vunpack.c.l.bf16 %v859
          %v876 = vunpack.c.l.bf16 %v860
          %v877 = vunpack.c.l.bf16 %v861
          %v878 = vunpack.c.l.bf16 %v862
          %v879 = vunpack.c.l.bf16 %v863
          %v880 = vunpack.c.l.bf16 %v864
          %v881 = vunpack.c.l.bf16 %v865
          %v882 = vunpack.c.l.bf16 %v866
          %v883 = vunpack.c.l.bf16 %v867
          %v884 = vunpack.c.l.bf16 %v868
          %v885 = vunpack.c.l.bf16 %v869
          %v886 = vunpack.c.l.bf16 %v870
          %v887 = vunpack.c.l.bf16 %v871
          %v888 = vunpack.c.l.bf16 %v872
          %v889 = vlaneseq
          %v890 = vshrl.u32 %v889, 7
          %v891 = vadd.s32 %v890, 8
          %v892 = vadd.s32 %v890, 16
          %v893 = vadd.s32 %v890, 24
          %v894 = vadd.s32 %v890, 32
          %v895 = vadd.s32 %v890, 40
          %v896 = vadd.s32 %v890, 48
          %v897 = vadd.s32 %v890, 56
          %v898 = vadd.s32 %v890, 64
          %v899 = vadd.s32 %v890, 72
          %v900 = vadd.s32 %v890, 80
          %v901 = vadd.s32 %v890, 88
          %v902 = vadd.s32 %v890, 96
          %v903 = vadd.s32 %v890, 104
          %v904 = vadd.s32 %v890, 112
          %v905 = vadd.s32 %v890, 120
          %v906 = vlaneseq
          %v907 = vand.u32 %v906, 127
          %vm908 = vcmp.eq.s32.totalorder %v890, %v907
          %vm909 = vcmp.eq.s32.totalorder %v891, %v907
          %vm910 = vcmp.eq.s32.totalorder %v892, %v907
          %vm911 = vcmp.eq.s32.totalorder %v893, %v907
          %vm912 = vcmp.eq.s32.totalorder %v894, %v907
          %vm913 = vcmp.eq.s32.totalorder %v895, %v907
          %vm914 = vcmp.eq.s32.totalorder %v896, %v907
          %vm915 = vcmp.eq.s32.totalorder %v897, %v907
          %vm916 = vcmp.eq.s32.totalorder %v898, %v907
          %vm917 = vcmp.eq.s32.totalorder %v899, %v907
          %vm918 = vcmp.eq.s32.totalorder %v900, %v907
          %vm919 = vcmp.eq.s32.totalorder %v901, %v907
          %vm920 = vcmp.eq.s32.totalorder %v902, %v907
          %vm921 = vcmp.eq.s32.totalorder %v903, %v907
          %vm922 = vcmp.eq.s32.totalorder %v904, %v907
          %vm923 = vcmp.eq.s32.totalorder %v905, %v907
          %v924 = vsel %vm908, 1.0, 0.0
          %v925 = vsel %vm909, 1.0, 0.0
          %v926 = vsel %vm910, 1.0, 0.0
          %v927 = vsel %vm911, 1.0, 0.0
          %v928 = vsel %vm912, 1.0, 0.0
          %v929 = vsel %vm913, 1.0, 0.0
          %v930 = vsel %vm914, 1.0, 0.0
          %v931 = vsel %vm915, 1.0, 0.0
          %v932 = vsel %vm916, 1.0, 0.0
          %v933 = vsel %vm917, 1.0, 0.0
          %v934 = vsel %vm918, 1.0, 0.0
          %v935 = vsel %vm919, 1.0, 0.0
          %v936 = vsel %vm920, 1.0, 0.0
          %v937 = vsel %vm921, 1.0, 0.0
          %v938 = vsel %vm922, 1.0, 0.0
          %v939 = vsel %vm923, 1.0, 0.0
          %v940 = vld [vmem:[#allocation2] sm:$0x1]
          %v941 = vstv %s855
          %v942 = vmul.f32 %v940, %v941
          %v943 = vld [vmem:[#allocation3] sm:$0xff]
          %v944 = vld [vmem:[#allocation3 + $0x8] sm:$0xff]
          %v945 = vld [vmem:[#allocation3 + $0x10] sm:$0xff]
          %v946 = vld [vmem:[#allocation3 + $0x18] sm:$0xff]
          %v947 = vld [vmem:[#allocation3 + $0x20] sm:$0xff]
          %v948 = vld [vmem:[#allocation3 + $0x28] sm:$0xff]
          %v949 = vld [vmem:[#allocation3 + $0x30] sm:$0xff]
          %v950 = vld [vmem:[#allocation3 + $0x38] sm:$0xff]
          %v951 = vld [vmem:[#allocation3 + $0x40] sm:$0xff]
          %v952 = vld [vmem:[#allocation3 + $0x48] sm:$0xff]
          %v953 = vld [vmem:[#allocation3 + $0x50] sm:$0xff]
          %v954 = vld [vmem:[#allocation3 + $0x58] sm:$0xff]
          %v955 = vld [vmem:[#allocation3 + $0x60] sm:$0xff]
          %v956 = vld [vmem:[#allocation3 + $0x68] sm:$0xff]
          %v957 = vld [vmem:[#allocation3 + $0x70] sm:$0xff]
          %v958 = vld [vmem:[#allocation3 + $0x78] sm:$0xff]
          %v959 = vmul.f32 %v943, %v941
          %v960 = vmul.f32 %v944, %v941
          %v961 = vmul.f32 %v945, %v941
          %v962 = vmul.f32 %v946, %v941
          %v963 = vmul.f32 %v947, %v941
          %v964 = vmul.f32 %v948, %v941
          %v965 = vmul.f32 %v949, %v941
          %v966 = vmul.f32 %v950, %v941
          %v967 = vmul.f32 %v951, %v941
          %v968 = vmul.f32 %v952, %v941
          %v969 = vmul.f32 %v953, %v941
          %v970 = vmul.f32 %v954, %v941
          %v971 = vmul.f32 %v955, %v941
          %v972 = vmul.f32 %v956, %v941
          %v973 = vmul.f32 %v957, %v941
          %v974 = vmul.f32 %v958, %v941
          %v975 = vmul.f32 %v959, %v924
          %v976 = vmul.f32 %v960, %v925
          %v977 = vmul.f32 %v961, %v926
          %v978 = vmul.f32 %v962, %v927
          %v979 = vmul.f32 %v963, %v928
          %v980 = vmul.f32 %v964, %v929
          %v981 = vmul.f32 %v965, %v930
          %v982 = vmul.f32 %v966, %v931
          %v983 = vmul.f32 %v967, %v932
          %v984 = vmul.f32 %v968, %v933
          %v985 = vmul.f32 %v969, %v934
          %v986 = vmul.f32 %v970, %v935
          %v987 = vmul.f32 %v971, %v936
          %v988 = vmul.f32 %v972, %v937
          %v989 = vmul.f32 %v973, %v938
          %v990 = vmul.f32 %v974, %v939
          %v991 = vadd.f32 %v975, %v976
          %v992 = vadd.f32 %v991, %v977
          %v993 = vadd.f32 %v992, %v978
          %v994 = vadd.f32 %v993, %v979
          %v995 = vadd.f32 %v994, %v980
          %v996 = vadd.f32 %v995, %v981
          %v997 = vadd.f32 %v996, %v982
          %v998 = vadd.f32 %v997, %v983
          %v999 = vadd.f32 %v998, %v984
          %v1000 = vadd.f32 %v999, %v985
          %v1001 = vadd.f32 %v1000, %v986
          %v1002 = vadd.f32 %v1001, %v987
          %v1003 = vadd.f32 %v1002, %v988
          %v1004 = vadd.f32 %v1003, %v989
          %v1005 = vadd.f32 %v1004, %v990
          %v1006 = vrot.slane %v1005, 4
          %v1007 = vadd.f32 %v1005, %v1006
          %v1008 = vrot.slane %v1007, 2
          %v1009 = vadd.f32 %v1007, %v1008
          %v1010 = vrot.slane %v1009, 1
          %v1011 = vadd.f32 %v1009, %v1010
          %v1012 = vmul.f32 %v942, %v942
          %v1013 = vsub.f32 %v1011, %v1012
          %v1014 = vmax.f32 %v1013, 0.0
          %v1015 = vadd.f32 %v1014, 1e-05
          %v1016 = vrsqrt.pop %v1015
          %v1017 = vmul.f32 %v1016, %v1015
          %v1018 = vmul.f32 %v1017, %v1016
          %v1019 = vmul.f32 0.5, %v1018
          %v1020 = vsub.f32 1.5, %v1019
          %v1021 = vmul.f32 %v1016, %v1020
          %vm1022 = vweird.f32 %v1015
          %vm1023 = vweird.f32 %v1016
          %vm1024 = vmor %vm1022, %vm1023
          %v1025 = vsel %vm1024, %v1016, %v1021
          %v1027 = vrot.slane %v1025, 7
          %v1029 = vmul.f32 %v856, %v1027
          %v1030 = vperm.slane %v1029, 1
          %v1031 = vmul.f32 %v924, %v1030
          %v1032 = vmul.f32 %v925, %v1030
          %v1033 = vmul.f32 %v926, %v1030
          %v1034 = vmul.f32 %v927, %v1030
          %v1035 = vmul.f32 %v928, %v1030
          %v1036 = vmul.f32 %v929, %v1030
          %v1037 = vmul.f32 %v930, %v1030
          %v1038 = vmul.f32 %v931, %v1030
          %v1039 = vmul.f32 %v932, %v1030
          %v1040 = vmul.f32 %v933, %v1030
          %v1041 = vmul.f32 %v934, %v1030
          %v1042 = vmul.f32 %v935, %v1030
          %v1043 = vmul.f32 %v936, %v1030
          %v1044 = vmul.f32 %v937, %v1030
          %v1045 = vmul.f32 %v938, %v1030
          %v1046 = vmul.f32 %v939, %v1030
          %1047 = vmatpush.msra.mxu0 %v888
          %1048 = vmatpush.msra.mxu0 %v887
          %1049 = vmatpush.msra.mxu0 %v886
          %1050 = vmatpush.msra.mxu0 %v885
          %1051 = vmatpush.msra.mxu0 %v884
          %1052 = vmatpush.msra.mxu0 %v883
          %1053 = vmatpush.msra.mxu0 %v882
          %1054 = vmatpush.msra.mxu0 %v881
          %1055 = vmatpush.msra.mxu0 %v880
          %1056 = vmatpush.msra.mxu0 %v879
          %1057 = vmatpush.msra.mxu0 %v878
          %1058 = vmatpush.msra.mxu0 %v877
          %1059 = vmatpush.msra.mxu0 %v876
          %1060 = vmatpush.msra.mxu0 %v875
          %1061 = vmatpush.msra.mxu0 %v874
          %1062 = vmatpush.msra.mxu0 %v873
          %1063 = vmatmul.f32.gmra.mxu0 %v1031
          %v1064 = vpop.f32.mrf.mxu0
          %v1065 = vadd.f32 0.0, %v1064
          %1066 = vmatmul.f32.gmra.mxu0 %v1032
          %v1067 = vpop.f32.mrf.mxu0
          %v1068 = vadd.f32 0.0, %v1067
          %1069 = vmatmul.f32.gmra.mxu0 %v1033
          %v1070 = vpop.f32.mrf.mxu0
          %v1071 = vadd.f32 0.0, %v1070
          %1072 = vmatmul.f32.gmra.mxu0 %v1034
          %v1073 = vpop.f32.mrf.mxu0
          %v1074 = vadd.f32 0.0, %v1073
          %1075 = vmatmul.f32.gmra.mxu0 %v1035
          %v1076 = vpop.f32.mrf.mxu0
          %v1077 = vadd.f32 0.0, %v1076
          %1078 = vmatmul.f32.gmra.mxu0 %v1036
          %v1079 = vpop.f32.mrf.mxu0
          %v1080 = vadd.f32 0.0, %v1079
          %1081 = vmatmul.f32.gmra.mxu0 %v1037
          %v1082 = vpop.f32.mrf.mxu0
          %v1083 = vadd.f32 0.0, %v1082
          %1084 = vmatmul.f32.gmra.mxu0 %v1038
          %v1085 = vpop.f32.mrf.mxu0
          %v1086 = vadd.f32 0.0, %v1085
          %1087 = vmatmul.f32.gmra.mxu0 %v1039
          %v1088 = vpop.f32.mrf.mxu0
          %v1089 = vadd.f32 0.0, %v1088
          %1090 = vmatmul.f32.gmra.mxu0 %v1040
          %v1091 = vpop.f32.mrf.mxu0
          %v1092 = vadd.f32 0.0, %v1091
          %1093 = vmatmul.f32.gmra.mxu0 %v1041
          %v1094 = vpop.f32.mrf.mxu0
          %v1095 = vadd.f32 0.0, %v1094
          %1096 = vmatmul.f32.gmra.mxu0 %v1042
          %v1097 = vpop.f32.mrf.mxu0
          %v1098 = vadd.f32 0.0, %v1097
          %1099 = vmatmul.f32.gmra.mxu0 %v1043
          %v1100 = vpop.f32.mrf.mxu0
          %v1101 = vadd.f32 0.0, %v1100
          %1102 = vmatmul.f32.gmra.mxu0 %v1044
          %v1103 = vpop.f32.mrf.mxu0
          %v1104 = vadd.f32 0.0, %v1103
          %1105 = vmatmul.f32.gmra.mxu0 %v1045
          %v1106 = vpop.f32.mrf.mxu0
          %v1107 = vadd.f32 0.0, %v1106
          %1108 = vmatmul.f32.gmra.mxu0 %v1046
          %v1109 = vpop.f32.mrf.mxu0
          %v1110 = vadd.f32 0.0, %v1109
          %1111 = vdwg.mxu0
          %v1113 = vperm.slane %v942, 0
          %v1115 = vmul.f32 %v924, %v1113
          %v1116 = vmul.f32 %v925, %v1113
          %v1117 = vmul.f32 %v926, %v1113
          %v1118 = vmul.f32 %v927, %v1113
          %v1119 = vmul.f32 %v928, %v1113
          %v1120 = vmul.f32 %v929, %v1113
          %v1121 = vmul.f32 %v930, %v1113
          %v1122 = vmul.f32 %v931, %v1113
          %v1123 = vmul.f32 %v932, %v1113
          %v1124 = vmul.f32 %v933, %v1113
          %v1125 = vmul.f32 %v934, %v1113
          %v1126 = vmul.f32 %v935, %v1113
          %v1127 = vmul.f32 %v936, %v1113
          %v1128 = vmul.f32 %v937, %v1113
          %v1129 = vmul.f32 %v938, %v1113
          %v1130 = vmul.f32 %v939, %v1113
          %1131 = vmatpush.msra.mxu0 %v1110
          %1132 = vmatpush.msra.mxu0 %v1107
          %1133 = vmatpush.msra.mxu0 %v1104
          %1134 = vmatpush.msra.mxu0 %v1101
          %1135 = vmatpush.msra.mxu0 %v1098
          %1136 = vmatpush.msra.mxu0 %v1095
          %1137 = vmatpush.msra.mxu0 %v1092
          %1138 = vmatpush.msra.mxu0 %v1089
          %1139 = vmatpush.msra.mxu0 %v1086
          %1140 = vmatpush.msra.mxu0 %v1083
          %1141 = vmatpush.msra.mxu0 %v1080
          %1142 = vmatpush.msra.mxu0 %v1077
          %1143 = vmatpush.msra.mxu0 %v1074
          %1144 = vmatpush.msra.mxu0 %v1071
          %1145 = vmatpush.msra.mxu0 %v1068
          %1146 = vmatpush.msra.mxu0 %v1065
          %1147 = vmatmul.f32.gmra.mxu0 %v1115
          %v1148 = vpop.f32.mrf.mxu0
          %v1149 = vadd.f32 0.0, %v1148
          %1150 = vmatmul.f32.gmra.mxu0 %v1116
          %v1151 = vpop.f32.mrf.mxu0
          %v1152 = vadd.f32 0.0, %v1151
          %1153 = vmatmul.f32.gmra.mxu0 %v1117
          %v1154 = vpop.f32.mrf.mxu0
          %v1155 = vadd.f32 0.0, %v1154
          %1156 = vmatmul.f32.gmra.mxu0 %v1118
          %v1157 = vpop.f32.mrf.mxu0
          %v1158 = vadd.f32 0.0, %v1157
          %1159 = vmatmul.f32.gmra.mxu0 %v1119
          %v1160 = vpop.f32.mrf.mxu0
          %v1161 = vadd.f32 0.0, %v1160
          %1162 = vmatmul.f32.gmra.mxu0 %v1120
          %v1163 = vpop.f32.mrf.mxu0
          %v1164 = vadd.f32 0.0, %v1163
          %1165 = vmatmul.f32.gmra.mxu0 %v1121
          %v1166 = vpop.f32.mrf.mxu0
          %v1167 = vadd.f32 0.0, %v1166
          %1168 = vmatmul.f32.gmra.mxu0 %v1122
          %v1169 = vpop.f32.mrf.mxu0
          %v1170 = vadd.f32 0.0, %v1169
          %1171 = vmatmul.f32.gmra.mxu0 %v1123
          %v1172 = vpop.f32.mrf.mxu0
          %v1173 = vadd.f32 0.0, %v1172
          %1174 = vmatmul.f32.gmra.mxu0 %v1124
          %v1175 = vpop.f32.mrf.mxu0
          %v1176 = vadd.f32 0.0, %v1175
          %1177 = vmatmul.f32.gmra.mxu0 %v1125
          %v1178 = vpop.f32.mrf.mxu0
          %v1179 = vadd.f32 0.0, %v1178
          %1180 = vmatmul.f32.gmra.mxu0 %v1126
          %v1181 = vpop.f32.mrf.mxu0
          %v1182 = vadd.f32 0.0, %v1181
          %1183 = vmatmul.f32.gmra.mxu0 %v1127
          %v1184 = vpop.f32.mrf.mxu0
          %v1185 = vadd.f32 0.0, %v1184
          %1186 = vmatmul.f32.gmra.mxu0 %v1128
          %v1187 = vpop.f32.mrf.mxu0
          %v1188 = vadd.f32 0.0, %v1187
          %1189 = vmatmul.f32.gmra.mxu0 %v1129
          %v1190 = vpop.f32.mrf.mxu0
          %v1191 = vadd.f32 0.0, %v1190
          %1192 = vmatmul.f32.gmra.mxu0 %v1130
          %v1193 = vpop.f32.mrf.mxu0
          %v1194 = vadd.f32 0.0, %v1193
          %1195 = vdwg.mxu0
          %v1196 = vadd.f32 %v1149, %v1152
          %v1197 = vadd.f32 %v1196, %v1155
          %v1198 = vadd.f32 %v1197, %v1158
          %v1199 = vadd.f32 %v1198, %v1161
          %v1200 = vadd.f32 %v1199, %v1164
          %v1201 = vadd.f32 %v1200, %v1167
          %v1202 = vadd.f32 %v1201, %v1170
          %v1203 = vadd.f32 %v1202, %v1173
          %v1204 = vadd.f32 %v1203, %v1176
          %v1205 = vadd.f32 %v1204, %v1179
          %v1206 = vadd.f32 %v1205, %v1182
          %v1207 = vadd.f32 %v1206, %v1185
          %v1208 = vadd.f32 %v1207, %v1188
          %v1209 = vadd.f32 %v1208, %v1191
          %v1210 = vadd.f32 %v1209, %v1194
          %v1211 = vrot.slane %v1210, 4
          %v1212 = vadd.f32 %v1210, %v1211
          %v1213 = vrot.slane %v1212, 2
          %v1214 = vadd.f32 %v1212, %v1213
          %v1215 = vrot.slane %v1214, 1
          %v1216 = vadd.f32 %v1214, %v1215
          %1217 = vmatpush.msra.mxu0 %v1110
          %1218 = vmatpush.msra.mxu0 %v1107
          %1219 = vmatpush.msra.mxu0 %v1104
          %1220 = vmatpush.msra.mxu0 %v1101
          %1221 = vmatpush.msra.mxu0 %v1098
          %1222 = vmatpush.msra.mxu0 %v1095
          %1223 = vmatpush.msra.mxu0 %v1092
          %1224 = vmatpush.msra.mxu0 %v1089
          %1225 = vmatpush.msra.mxu0 %v1086
          %1226 = vmatpush.msra.mxu0 %v1083
          %1227 = vmatpush.msra.mxu0 %v1080
          %1228 = vmatpush.msra.mxu0 %v1077
          %1229 = vmatpush.msra.mxu0 %v1074
          %1230 = vmatpush.msra.mxu0 %v1071
          %1231 = vmatpush.msra.mxu0 %v1068
          %1232 = vmatpush.msra.mxu0 %v1065
          %1233 = vmatmul.f32.gmra.mxu0 %v959
          %v1234 = vpop.f32.mrf.mxu0
          %v1235 = vadd.f32 0.0, %v1234
          %1236 = vmatmul.f32.gmra.mxu0 %v960
          %v1237 = vpop.f32.mrf.mxu0
          %v1238 = vadd.f32 0.0, %v1237
          %1239 = vmatmul.f32.gmra.mxu0 %v961
          %v1240 = vpop.f32.mrf.mxu0
          %v1241 = vadd.f32 0.0, %v1240
          %1242 = vmatmul.f32.gmra.mxu0 %v962
          %v1243 = vpop.f32.mrf.mxu0
          %v1244 = vadd.f32 0.0, %v1243
          %1245 = vmatmul.f32.gmra.mxu0 %v963
          %v1246 = vpop.f32.mrf.mxu0
          %v1247 = vadd.f32 0.0, %v1246
          %1248 = vmatmul.f32.gmra.mxu0 %v964
          %v1249 = vpop.f32.mrf.mxu0
          %v1250 = vadd.f32 0.0, %v1249
          %1251 = vmatmul.f32.gmra.mxu0 %v965
          %v1252 = vpop.f32.mrf.mxu0
          %v1253 = vadd.f32 0.0, %v1252
          %1254 = vmatmul.f32.gmra.mxu0 %v966
          %v1255 = vpop.f32.mrf.mxu0
          %v1256 = vadd.f32 0.0, %v1255
          %1257 = vmatmul.f32.gmra.mxu0 %v967
          %v1258 = vpop.f32.mrf.mxu0
          %v1259 = vadd.f32 0.0, %v1258
          %1260 = vmatmul.f32.gmra.mxu0 %v968
          %v1261 = vpop.f32.mrf.mxu0
          %v1262 = vadd.f32 0.0, %v1261
          %1263 = vmatmul.f32.gmra.mxu0 %v969
          %v1264 = vpop.f32.mrf.mxu0
          %v1265 = vadd.f32 0.0, %v1264
          %1266 = vmatmul.f32.gmra.mxu0 %v970
          %v1267 = vpop.f32.mrf.mxu0
          %v1268 = vadd.f32 0.0, %v1267
          %1269 = vmatmul.f32.gmra.mxu0 %v971
          %v1270 = vpop.f32.mrf.mxu0
          %v1271 = vadd.f32 0.0, %v1270
          %1272 = vmatmul.f32.gmra.mxu0 %v972
          %v1273 = vpop.f32.mrf.mxu0
          %v1274 = vadd.f32 0.0, %v1273
          %1275 = vmatmul.f32.gmra.mxu0 %v973
          %v1276 = vpop.f32.mrf.mxu0
          %v1277 = vadd.f32 0.0, %v1276
          %1278 = vmatmul.f32.gmra.mxu0 %v974
          %v1279 = vpop.f32.mrf.mxu0
          %v1280 = vadd.f32 0.0, %v1279
          %1281 = vdwg.mxu0
          %v1282 = vmul.f32 %v1065, %v1235
          %v1283 = vmul.f32 %v1068, %v1238
          %v1284 = vmul.f32 %v1071, %v1241
          %v1285 = vmul.f32 %v1074, %v1244
          %v1286 = vmul.f32 %v1077, %v1247
          %v1287 = vmul.f32 %v1080, %v1250
          %v1288 = vmul.f32 %v1083, %v1253
          %v1289 = vmul.f32 %v1086, %v1256
          %v1290 = vmul.f32 %v1089, %v1259
          %v1291 = vmul.f32 %v1092, %v1262
          %v1292 = vmul.f32 %v1095, %v1265
          %v1293 = vmul.f32 %v1098, %v1268
          %v1294 = vmul.f32 %v1101, %v1271
          %v1295 = vmul.f32 %v1104, %v1274
          %v1296 = vmul.f32 %v1107, %v1277
          %v1297 = vmul.f32 %v1110, %v1280
          %v1298 = vadd.f32 %v1282, %v1283
          %v1299 = vadd.f32 %v1298, %v1284
          %v1300 = vadd.f32 %v1299, %v1285
          %v1301 = vadd.f32 %v1300, %v1286
          %v1302 = vadd.f32 %v1301, %v1287
          %v1303 = vadd.f32 %v1302, %v1288
          %v1304 = vadd.f32 %v1303, %v1289
          %v1305 = vadd.f32 %v1304, %v1290
          %v1306 = vadd.f32 %v1305, %v1291
          %v1307 = vadd.f32 %v1306, %v1292
          %v1308 = vadd.f32 %v1307, %v1293
          %v1309 = vadd.f32 %v1308, %v1294
          %v1310 = vadd.f32 %v1309, %v1295
          %v1311 = vadd.f32 %v1310, %v1296
          %v1312 = vadd.f32 %v1311, %v1297
          %v1313 = vrot.slane %v1312, 4
          %v1314 = vadd.f32 %v1312, %v1313
          %v1315 = vrot.slane %v1314, 2
          %v1316 = vadd.f32 %v1314, %v1315
          %v1317 = vrot.slane %v1316, 1
          %v1318 = vadd.f32 %v1316, %v1317
          %v1319 = vmul.f32 %v1216, %v1216
          %v1320 = vsub.f32 %v1318, %v1319
          %v1321 = vmax.f32 %v1320, 0.0
          %v1322 = vadd.f32 %v1321, 1e-05
          %v1323 = vrsqrt.pop %v1322
          %v1324 = vmul.f32 %v1323, %v1322
          %v1325 = vmul.f32 %v1324, %v1323
          %v1326 = vmul.f32 0.5, %v1325
          %v1327 = vsub.f32 1.5, %v1326
          %v1328 = vmul.f32 %v1323, %v1327
          %vm1329 = vweird.f32 %v1322
          %vm1330 = vweird.f32 %v1323
          %vm1331 = vmor %vm1329, %vm1330
          %v1332 = vsel %vm1331, %v1323, %v1328
          %v1333 = vmul.f32 %v856, %v1332
          %v1334 = vperm.slane %v1333, 4
          %v1335 = vmul.f32 %v1065, %v1334
          %v1336 = vmul.f32 %v1068, %v1334
          %v1337 = vmul.f32 %v1071, %v1334
          %v1338 = vmul.f32 %v1074, %v1334
          %v1339 = vmul.f32 %v1077, %v1334
          %v1340 = vmul.f32 %v1080, %v1334
          %v1341 = vmul.f32 %v1083, %v1334
          %v1342 = vmul.f32 %v1086, %v1334
          %v1343 = vmul.f32 %v1089, %v1334
          %v1344 = vmul.f32 %v1092, %v1334
          %v1345 = vmul.f32 %v1095, %v1334
          %v1346 = vmul.f32 %v1098, %v1334
          %v1347 = vmul.f32 %v1101, %v1334
          %v1348 = vmul.f32 %v1104, %v1334
          %v1349 = vmul.f32 %v1107, %v1334
          %v1350 = vmul.f32 %v1110, %v1334
          %v1351 = vld [vmem:[%s460] sm:$0xf]
          %v1352 = vld [vmem:[%s460 + $0x4] sm:$0xf]
          %v1353 = vld [vmem:[%s460 + $0x8] sm:$0xf]
          %v1354 = vld [vmem:[%s460 + $0xc] sm:$0xf]
          %v1355 = vld [vmem:[%s460 + $0x10] sm:$0xf]
          %v1356 = vld [vmem:[%s460 + $0x14] sm:$0xf]
          %v1357 = vld [vmem:[%s460 + $0x18] sm:$0xf]
          %v1358 = vld [vmem:[%s460 + $0x1c] sm:$0xf]
          %v1359 = vld [vmem:[%s460 + $0x20] sm:$0xf]
          %v1360 = vld [vmem:[%s460 + $0x24] sm:$0xf]
          %v1361 = vld [vmem:[%s460 + $0x28] sm:$0xf]
          %v1362 = vld [vmem:[%s460 + $0x2c] sm:$0xf]
          %v1363 = vld [vmem:[%s460 + $0x30] sm:$0xf]
          %v1364 = vld [vmem:[%s460 + $0x34] sm:$0xf]
          %v1365 = vld [vmem:[%s460 + $0x38] sm:$0xf]
          %v1366 = vld [vmem:[%s460 + $0x3c] sm:$0xf]
          %v1367 = vunpack.c.l.bf16 %v1351
          %v1368 = vunpack.c.l.bf16 %v1352
          %v1369 = vunpack.c.l.bf16 %v1353
          %v1370 = vunpack.c.l.bf16 %v1354
          %v1371 = vunpack.c.l.bf16 %v1355
          %v1372 = vunpack.c.l.bf16 %v1356
          %v1373 = vunpack.c.l.bf16 %v1357
          %v1374 = vunpack.c.l.bf16 %v1358
          %v1375 = vunpack.c.l.bf16 %v1359
          %v1376 = vunpack.c.l.bf16 %v1360
          %v1377 = vunpack.c.l.bf16 %v1361
          %v1378 = vunpack.c.l.bf16 %v1362
          %v1379 = vunpack.c.l.bf16 %v1363
          %v1380 = vunpack.c.l.bf16 %v1364
          %v1381 = vunpack.c.l.bf16 %v1365
          %v1382 = vunpack.c.l.bf16 %v1366
          %1383 = vmatpush.msra.mxu0 %v1350
          %1384 = vmatpush.msra.mxu0 %v1349
          %1385 = vmatpush.msra.mxu0 %v1348
          %1386 = vmatpush.msra.mxu0 %v1347
          %1387 = vmatpush.msra.mxu0 %v1346
          %1388 = vmatpush.msra.mxu0 %v1345
          %1389 = vmatpush.msra.mxu0 %v1344
          %1390 = vmatpush.msra.mxu0 %v1343
          %1391 = vmatpush.msra.mxu0 %v1342
          %1392 = vmatpush.msra.mxu0 %v1341
          %1393 = vmatpush.msra.mxu0 %v1340
          %1394 = vmatpush.msra.mxu0 %v1339
          %1395 = vmatpush.msra.mxu0 %v1338
          %1396 = vmatpush.msra.mxu0 %v1337
          %1397 = vmatpush.msra.mxu0 %v1336
          %1398 = vmatpush.msra.mxu0 %v1335
          %1399 = vmatmul.f32.gmra.mxu0 %v1367
          %v1400 = vpop.f32.mrf.mxu0
          %v1401 = vadd.f32 0.0, %v1400
          %1402 = vmatmul.f32.gmra.mxu0 %v1368
          %v1403 = vpop.f32.mrf.mxu0
          %v1404 = vadd.f32 0.0, %v1403
          %1405 = vmatmul.f32.gmra.mxu0 %v1369
          %v1406 = vpop.f32.mrf.mxu0
          %v1407 = vadd.f32 0.0, %v1406
          %1408 = vmatmul.f32.gmra.mxu0 %v1370
          %v1409 = vpop.f32.mrf.mxu0
          %v1410 = vadd.f32 0.0, %v1409
          %1411 = vmatmul.f32.gmra.mxu0 %v1371
          %v1412 = vpop.f32.mrf.mxu0
          %v1413 = vadd.f32 0.0, %v1412
          %1414 = vmatmul.f32.gmra.mxu0 %v1372
          %v1415 = vpop.f32.mrf.mxu0
          %v1416 = vadd.f32 0.0, %v1415
          %1417 = vmatmul.f32.gmra.mxu0 %v1373
          %v1418 = vpop.f32.mrf.mxu0
          %v1419 = vadd.f32 0.0, %v1418
          %1420 = vmatmul.f32.gmra.mxu0 %v1374
          %v1421 = vpop.f32.mrf.mxu0
          %v1422 = vadd.f32 0.0, %v1421
          %1423 = vmatmul.f32.gmra.mxu0 %v1375
          %v1424 = vpop.f32.mrf.mxu0
          %v1425 = vadd.f32 0.0, %v1424
          %1426 = vmatmul.f32.gmra.mxu0 %v1376
          %v1427 = vpop.f32.mrf.mxu0
          %v1428 = vadd.f32 0.0, %v1427
          %1429 = vmatmul.f32.gmra.mxu0 %v1377
          %v1430 = vpop.f32.mrf.mxu0
          %v1431 = vadd.f32 0.0, %v1430
          %1432 = vmatmul.f32.gmra.mxu0 %v1378
          %v1433 = vpop.f32.mrf.mxu0
          %v1434 = vadd.f32 0.0, %v1433
          %1435 = vmatmul.f32.gmra.mxu0 %v1379
          %v1436 = vpop.f32.mrf.mxu0
          %v1437 = vadd.f32 0.0, %v1436
          %1438 = vmatmul.f32.gmra.mxu0 %v1380
          %v1439 = vpop.f32.mrf.mxu0
          %v1440 = vadd.f32 0.0, %v1439
          %1441 = vmatmul.f32.gmra.mxu0 %v1381
          %v1442 = vpop.f32.mrf.mxu0
          %v1443 = vadd.f32 0.0, %v1442
          %1444 = vmatmul.f32.gmra.mxu0 %v1382
          %v1445 = vpop.f32.mrf.mxu0
          %v1446 = vadd.f32 0.0, %v1445
          %1447 = vdwg.mxu0
          %v1448 = vpack.c.bf16 %v1401, %v1401
          %v1449 = vpack.c.bf16 %v1404, %v1404
          %v1450 = vpack.c.bf16 %v1407, %v1407
          %v1451 = vpack.c.bf16 %v1410, %v1410
          %v1452 = vpack.c.bf16 %v1413, %v1413
          %v1453 = vpack.c.bf16 %v1416, %v1416
          %v1454 = vpack.c.bf16 %v1419, %v1419
          %v1455 = vpack.c.bf16 %v1422, %v1422
          %v1456 = vpack.c.bf16 %v1425, %v1425
          %v1457 = vpack.c.bf16 %v1428, %v1428
          %v1458 = vpack.c.bf16 %v1431, %v1431
          %v1459 = vpack.c.bf16 %v1434, %v1434
          %v1460 = vpack.c.bf16 %v1437, %v1437
          %v1461 = vpack.c.bf16 %v1440, %v1440
          %v1462 = vpack.c.bf16 %v1443, %v1443
          %v1463 = vpack.c.bf16 %v1446, %v1446
          %1464 = vst [vmem:[#allocation4] sm:$0xf] %v1448
          %1465 = vst [vmem:[#allocation4 + $0x4] sm:$0xf] %v1449
          %1466 = vst [vmem:[#allocation4 + $0x8] sm:$0xf] %v1450
          %1467 = vst [vmem:[#allocation4 + $0xc] sm:$0xf] %v1451
          %1468 = vst [vmem:[#allocation4 + $0x10] sm:$0xf] %v1452
          %1469 = vst [vmem:[#allocation4 + $0x14] sm:$0xf] %v1453
          %1470 = vst [vmem:[#allocation4 + $0x18] sm:$0xf] %v1454
          %1471 = vst [vmem:[#allocation4 + $0x1c] sm:$0xf] %v1455
          %1472 = vst [vmem:[#allocation4 + $0x20] sm:$0xf] %v1456
          %1473 = vst [vmem:[#allocation4 + $0x24] sm:$0xf] %v1457
          %1474 = vst [vmem:[#allocation4 + $0x28] sm:$0xf] %v1458
          %1475 = vst [vmem:[#allocation4 + $0x2c] sm:$0xf] %v1459
          %1476 = vst [vmem:[#allocation4 + $0x30] sm:$0xf] %v1460
          %1477 = vst [vmem:[#allocation4 + $0x34] sm:$0xf] %v1461
          %1478 = vst [vmem:[#allocation4 + $0x38] sm:$0xf] %v1462
          %1479 = vst [vmem:[#allocation4 + $0x3c] sm:$0xf] %v1463
          %v1480 = vmul.f32 %v1216, %v1333
          %v1482 = vrot.slane %v1480, 7
          %v1484 = vsub.f32 %v856, %v1482
          %1485 = vst [vmem:[#allocation5 - $0x5] sm:$0x20] %v1484
        $region52: #{_student_core.1} parent=35 // pred_fallthru
          _
        %p1486 = pnand %p832, %p537
        %p1487 = pneg %p1486
        // Predicated region
        $region53: #{_student_core.1} parent=35 // pred_check
          _
        $region54: #{_student_core.1} parent=35 // pred_check_branch
          %1489 = sbr.rel (%p1486) target = $region56
        $region55: #{_student_core.1} parent=35 // pred_region
          %v1490 = vld [vmem:[%s438] sm:$0xf]
          %v1491 = vld [vmem:[%s438 + $0x4] sm:$0xf]
          %v1492 = vld [vmem:[#allocation4] sm:$0xf]
          %v1493 = vld [vmem:[#allocation4 + $0x4] sm:$0xf]
          %v1494 = vld [vmem:[#allocation4 + $0x8] sm:$0xf]
          %v1495 = vld [vmem:[#allocation4 + $0xc] sm:$0xf]
          %v1496 = vld [vmem:[#allocation4 + $0x10] sm:$0xf]
          %v1497 = vld [vmem:[#allocation4 + $0x14] sm:$0xf]
          %v1498 = vld [vmem:[#allocation4 + $0x18] sm:$0xf]
          %v1499 = vld [vmem:[#allocation4 + $0x1c] sm:$0xf]
          %v1500 = vld [vmem:[#allocation4 + $0x20] sm:$0xf]
          %v1501 = vld [vmem:[#allocation4 + $0x24] sm:$0xf]
          %v1502 = vld [vmem:[#allocation4 + $0x28] sm:$0xf]
          %v1503 = vld [vmem:[#allocation4 + $0x2c] sm:$0xf]
          %v1504 = vld [vmem:[#allocation4 + $0x30] sm:$0xf]
          %v1505 = vld [vmem:[#allocation4 + $0x34] sm:$0xf]
          %v1506 = vld [vmem:[#allocation4 + $0x38] sm:$0xf]
          %v1507 = vld [vmem:[#allocation4 + $0x3c] sm:$0xf]
          %v1508 = vld [vmem:[#allocation5] sm:$0x1]
          %v1510 = vperm.slane %v1508, 0
          %v1514 = vunpack.c.l.b16 %v1490
          %v1515 = vunpack.c.l.b16 %v1491
          %v1516 = vpack.c.b16 %v1515, %v1514
          %v1534 = vunpack.c.l.b16 %v1492
          %v1535 = vunpack.c.l.b16 %v1493
          %v1536 = vunpack.c.l.b16 %v1494
          %v1537 = vunpack.c.l.b16 %v1495
          %v1538 = vunpack.c.l.b16 %v1496
          %v1539 = vunpack.c.l.b16 %v1497
          %v1540 = vunpack.c.l.b16 %v1498
          %v1541 = vunpack.c.l.b16 %v1499
          %v1542 = vunpack.c.l.b16 %v1500
          %v1543 = vunpack.c.l.b16 %v1501
          %v1544 = vunpack.c.l.b16 %v1502
          %v1545 = vunpack.c.l.b16 %v1503
          %v1546 = vunpack.c.l.b16 %v1504
          %v1547 = vunpack.c.l.b16 %v1505
          %v1548 = vunpack.c.l.b16 %v1506
          %v1549 = vunpack.c.l.b16 %v1507
          %v1550 = vpack.c.b16 %v1535, %v1534
          %v1551 = vpack.c.b16 %v1537, %v1536
          %v1552 = vpack.c.b16 %v1539, %v1538
          %v1553 = vpack.c.b16 %v1541, %v1540
          %v1554 = vpack.c.b16 %v1543, %v1542
          %v1555 = vpack.c.b16 %v1545, %v1544
          %v1556 = vpack.c.b16 %v1547, %v1546
          %v1557 = vpack.c.b16 %v1549, %v1548
          %1566 = vmatpush.bf16.msra.mxu0 %v1557
          %1567 = vmatpush.bf16.msra.mxu0 %v1556
          %1568 = vmatpush.bf16.msra.mxu0 %v1555
          %1569 = vmatpush.bf16.msra.mxu0 %v1554
          %1570 = vmatpush.bf16.msra.mxu0 %v1553
          %1571 = vmatpush.bf16.msra.mxu0 %v1552
          %1572 = vmatpush.bf16.msra.mxu0 %v1551
          %1573 = vmatpush.bf16.msra.mxu0 %v1550
          %1574 = vmatmul.bf16.gmra.mxu0 %v1516
          %v1575 = vpop.f32.mrf.mxu0
          %v1576 = vadd.f32 %v1510, %v1575
          %v1577 = vpop.f32.mrf.mxu0
          %v1578 = vadd.f32 %v1510, %v1577
          %1579 = vdwg.mxu0
          %v1580 = vpack.c.bf16 %v1576, %v1576
          %v1581 = vpack.c.bf16 %v1578, %v1578
          %1582 = vst [vmem:[%s486] sm:$0xf] %v1580
          %1583 = vst [vmem:[%s486 + $0x4] sm:$0xf] %v1581
        $region56: #{_student_core.1} parent=35 // pred_fallthru
          _
        %s1584 = sshra.s32 %s32, 7
        %s1585 = sand.u32 %s32, 127
        %s1586 = sadd.s32 %s1584, 2
        %s1587 = smul.u32 %s1586, 128
        %s1588 = sshra.s32 %s32, 7
        %s1589 = sand.u32 %s32, 127
        %s1590 = sadd.s32 %s1587, %s1589
        %s1591 = sld [smem:[#allocation7 + %s1590]]
        %s1592 = sadd.s32 %s1584, 1
        %s1593 = smul.u32 %s1592, 128
        %s1594 = sadd.s32 %s1593, %s1589
        %s1595 = sld [smem:[#allocation7 + %s1594]]
        %s1596 = ssub.s32 %s1595, 1
        %p1597 = scmp.lt.s32.totalorder %s34, %s1596
        %s1598 = scalar_select %p1597, %s34, %s1596
        %s1599 = smul.u32 %s33, %s1598
        %s1600 = sadd.s32 %s1591, %s1599
        %s1601 = smul.u32 2, %s1600
        %p1602 = scmp.lt.s32.totalorder %s1601, 3
        %s1603 = scalar_select %p1602, %s1601, 3
        %s1604 = smul.addr %s1603, 4
        %s1605 = scalar_lea.vmem %s5, %s1604
        // Predicated region
        $region57: #{_student_core.1} parent=35 // pred_check
          %p1606 = pneg %p234
        $region58: #{_student_core.1} parent=35 // pred_check_branch
          %1608 = sbr.rel (%p1606) target = $region60
        $region59: #{_student_core.1} parent=35 // pred_region
          %s1609 = sshra.s32 %s32, 7
          %s1610 = sand.u32 %s32, 127
          %s1611 = sadd.s32 %s1609, 2
          %s1612 = smul.u32 %s1611, 128
          %s1613 = sshra.s32 %s32, 7
          %s1614 = sand.u32 %s32, 127
          %s1615 = sadd.s32 %s1612, %s1614
          %s1616 = sld [smem:[#allocation7 + %s1615]]
          %s1617 = sadd.s32 %s1609, 1
          %s1618 = smul.u32 %s1617, 128
          %s1619 = sadd.s32 %s1618, %s1614
          %s1620 = sld [smem:[#allocation7 + %s1619]]
          %s1621 = ssub.s32 %s1620, 1
          %p1622 = scmp.lt.s32.totalorder %s34, %s1621
          %s1623 = scalar_select %p1622, %s34, %s1621
          %s1624 = smul.u32 %s33, %s1623
          %s1625 = sadd.s32 %s1616, %s1624
          %s1626 = smul.u32 2, %s1625
        $region60: #{_student_core.1} parent=35 // pred_fallthru
          _
      $region36: #{_student_core.1} parent=5 // pred_fallthru
        _
      %p1627 = scmp.le.s32.totalorder 2, %s22
      // Predicated region
      $region61: #{_student_core.1} parent=5 // pred_check
        %p1628 = pneg %p1627
      $region62: #{_student_core.1} parent=5 // pred_check_branch
        %1630 = sbr.rel (%p1628) target = $region64
      $region63: #{_student_core.1} parent=5 // pred_region
        %s1631 = ssub.s32 %s22, 2
        // Predicated region
        $region65: #{_student_core.1} parent=63 // pred_check
          %p1632 = pneg %p240
        $region66: #{_student_core.1} parent=63 // pred_check_branch
          %1634 = sbr.rel (%p1632) target = $region68
        $region67: #{_student_core.1} parent=63 // pred_region
          %s1635 = sshra.s32 %s35, 7
          %s1636 = sand.u32 %s35, 127
          %s1637 = sadd.s32 %s1635, 2
          %s1638 = smul.u32 %s1637, 128
          %s1639 = sshra.s32 %s35, 7
          %s1640 = sand.u32 %s35, 127
          %s1641 = sadd.s32 %s1638, %s1640
          %s1642 = sld [smem:[#allocation7 + %s1641]]
          %s1643 = sadd.s32 %s1635, 1
          %s1644 = smul.u32 %s1643, 128
          %s1645 = sadd.s32 %s1644, %s1640
          %s1646 = sld [smem:[#allocation7 + %s1645]]
          %s1647 = ssub.s32 %s1646, 1
          %p1648 = scmp.lt.s32.totalorder %s37, %s1647
          %s1649 = scalar_select %p1648, %s37, %s1647
          %s1650 = smul.u32 %s36, %s1649
          %s1651 = sadd.s32 %s1642, %s1650
          %s1652 = smul.u32 2, %s1651
          %p1653 = scmp.lt.s32.totalorder %s1652, 3
          %s1654 = scalar_select %p1653, %s1652, 3
          %s1655 = smul.addr %s1654, 4
          %s1656 = scalar_lea.vmem %s5, %s1655
        $region68: #{_student_core.1} parent=63 // pred_fallthru
          _
      $region64: #{_student_core.1} parent=5 // pred_fallthru
        _
    $region6: #{_student_core.1} parent=1 // loop_footer
      %s26 = sadd.s32 1, %s22
    $region7: #{_student_core.1} parent=1 // loop_footer_branch
      %21 = sbr.rel target = $region3
    $region8: #{_student_core.1} parent=1 // loop_exit
      _
    %1657 = vsyncpa [#allocation9], 1
    %s1658 = scalar_lea.sflag [#allocation9], 1
    %1659 = vsyncpa %s1658, 1

</llo_original>
